<compile_context>
chip_gen: v7x
topology: tpu7x:2x2x1
jax: 0.10.0
libtpu: 0.0.40
codegen_flags: <defaults>
</compile_context>

<pallas_src>
import jax
import jax.numpy as jnp
from jax.experimental import pallas as pl
from jax.experimental.pallas import tpu as pltpu

C_TILE = 640  # 5 * 128 lanes; grid = 1920 // 640 = 3 "parallel" steps


def _dwconv3x3_kernel(x_ref, w_ref, o_ref, halo_ref):
    """Depthwise 3x3 conv (stride 1, pad 1) for one channel tile.

    x_ref:    (H, W, Ct)       unpadded input slab
    w_ref:    (3, 3, Ct)       per-channel 3x3 filters
    o_ref:    (H, W, Ct)       output slab
    halo_ref: (H+2, W+2, Ct)   f32 VMEM scratch holding the zero-padded slab
    """
    H, W, _ = o_ref.shape

    # Build the zero-padded halo in VMEM (replaces a wrapper-side jnp.pad and
    # its extra HBM round trip).  Re-zeroed every grid step so correctness is
    # preserved when the "parallel" grid axis is sharded across TensorCores.
    halo_ref[...] = jnp.zeros_like(halo_ref)
    halo_ref[1:H + 1, 1:W + 1, :] = x_ref[...].astype(jnp.float32)

    acc = jnp.zeros(o_ref.shape, jnp.float32)
    # kw (sublane-axis) shift hoisted to the outer loop: only 3 shifted loads
    # per block instead of 9; the kh slice selects along the leading (untiled)
    # axis and is free.
    for kw in range(3):
        xs = halo_ref[:, kw:kw + W, :]                       # (H+2, W, Ct)
        for kh in range(3):
            acc = acc + xs[kh:kh + H] * w_ref[kh, kw, :].astype(jnp.float32)

    o_ref[...] = acc.astype(o_ref.dtype)


def depthwise_conv3x3(x_nchw, weight_oihw, *, c_tile=C_TILE):
    """x_nchw: (1, C, H, W) float32;  weight_oihw: (C, 1, 3, 3) float32."""
    n, c, h, w = x_nchw.shape
    assert n == 1 and c % c_tile == 0 and c_tile % 128 == 0

    # NCHW -> HWC so channels ride the 128-wide lane axis.
    x_hwc = jnp.transpose(x_nchw[0], (1, 2, 0))                 # (H, W, C)
    # (C, 1, 3, 3) -> (3, 3, C)
    w_hwc = jnp.transpose(weight_oihw[:, 0, :, :], (1, 2, 0))   # (3, 3, C)

    bytes_accessed = 4 * (x_hwc.size + w_hwc.size + h * w * c)

    out_hwc = pl.pallas_call(
        _dwconv3x3_kernel,
        out_shape=jax.ShapeDtypeStruct((h, w, c), x_nchw.dtype),
        grid_spec=pltpu.PrefetchScalarGridSpec(
            num_scalar_prefetch=0,
            grid=(c // c_tile,),
            in_specs=[
                pl.BlockSpec((h, w, c_tile), lambda ci: (0, 0, ci)),
                pl.BlockSpec((3, 3, c_tile), lambda ci: (0, 0, ci)),
            ],
            out_specs=pl.BlockSpec((h, w, c_tile), lambda ci: (0, 0, ci)),
            scratch_shapes=[pltpu.VMEM((h + 2, w + 2, c_tile), jnp.float32)],
        ),
        compiler_params=pltpu.CompilerParams(
            dimension_semantics=("parallel",)),
        cost_estimate=pl.CostEstimate(
            flops=2 * 9 * h * w * c,
            transcendentals=0,
            bytes_accessed=bytes_accessed),
    )(x_hwc, w_hwc)

    # HWC -> NCHW
    return jnp.transpose(out_hwc, (2, 0, 1))[None]


def _reference(x_nchw, weight_oihw):
    """Pure-JAX reference via lax.conv with feature_group_count."""
    c = x_nchw.shape[1]
    return jax.lax.conv_general_dilated(
        x_nchw, weight_oihw,
        window_strides=(1, 1), padding=((1, 1), (1, 1)),
        dimension_numbers=("NCHW", "OIHW", "NCHW"),
        feature_group_count=c,
    )


if __name__ == "__main__":
    key = jax.random.PRNGKey(0)
    k_x, k_w = jax.random.split(key)

    N, C, H, W = 1, 1920, 7, 7   # matches the PyTorch module's forward
    x = jax.random.normal(k_x, (N, C, H, W), dtype=jnp.float32)
    # Conv2d(1920, 1920, 3, stride=1, padding=1, groups=1920, bias=False)
    weight = jax.random.normal(k_w, (C, 1, 3, 3), dtype=jnp.float32) * 0.05

    dwconv = jax.jit(depthwise_conv3x3)
    out = jax.block_until_ready(dwconv(x, weight))

    ref = jax.block_until_ready(_reference(x, weight))
    assert out.shape == (N, C, H, W)
    assert jnp.allclose(out, ref, atol=1e-4, rtol=1e-4)

    print("KERNEL_OK")
</pallas_src>

<mosaic_0001>
module attributes {stable_mosaic.version = 11 : i64} {
  func.func @_dwconv3x3_kernel(%arg0: i32, %arg1: memref<7x7x640xf32, #tpu.memory_space<vmem>>, %arg2: memref<3x3x640xf32, #tpu.memory_space<vmem>>, %arg3: memref<7x7x640xf32, #tpu.memory_space<vmem>>, %arg4: memref<9x9x640xf32, #tpu.memory_space<vmem>>) attributes {dimension_semantics = [#tpu.dimension_semantics<parallel>], iteration_bounds = array<i64: 3>, scalar_prefetch = 0 : i64, scratch_operands = 1 : i64, tpu.core_type = #tpu.core_type<tc>, window_params = [{transform_indices = @transform_0, window_bounds = array<i64: 7, 7, 640>}, {transform_indices = @transform_1, window_bounds = array<i64: 3, 3, 640>}, {transform_indices = @transform_2, window_bounds = array<i64: 7, 7, 640>}]} {
    %cst = arith.constant 0.000000e+00 : f32
    %0 = vector.broadcast %cst : f32 to vector<9x9x640xf32>
    %c0 = arith.constant 0 : index
    %c0_0 = arith.constant 0 : index
    %c0_1 = arith.constant 0 : index
    %1 = vector.load %arg4[%c0, %c0_0, %c0_1] : memref<9x9x640xf32, #tpu.memory_space<vmem>>, vector<9x9x640xf32>
    tpu.vector_store %arg4[%c0, %c0_0, %c0_1], %0 {strides = array<i32>} : memref<9x9x640xf32, #tpu.memory_space<vmem>>, vector<9x9x640xf32>,
    %c0_2 = arith.constant 0 : index
    %c0_3 = arith.constant 0 : index
    %c0_4 = arith.constant 0 : index
    %2 = vector.load %arg1[%c0_2, %c0_3, %c0_4] : memref<7x7x640xf32, #tpu.memory_space<vmem>>, vector<7x7x640xf32>
    %c1 = arith.constant 1 : index
    %c1_5 = arith.constant 1 : index
    %c0_6 = arith.constant 0 : index
    %3 = vector.load %arg4[%c1, %c1_5, %c0_6] : memref<9x9x640xf32, #tpu.memory_space<vmem>>, vector<7x7x640xf32>
    tpu.vector_store %arg4[%c1, %c1_5, %c0_6], %2 {strides = array<i32>} : memref<9x9x640xf32, #tpu.memory_space<vmem>>, vector<7x7x640xf32>,
    %cst_7 = arith.constant 0.000000e+00 : f32
    %4 = vector.broadcast %cst_7 : f32 to vector<7x7x640xf32>
    %c0_8 = arith.constant 0 : index
    %c0_9 = arith.constant 0 : index
    %c0_10 = arith.constant 0 : index
    %5 = vector.load %arg4[%c0_8, %c0_9, %c0_10] : memref<9x9x640xf32, #tpu.memory_space<vmem>>, vector<9x7x640xf32>
    %6 = vector.extract_strided_slice %5 {offsets = [0, 0, 0], sizes = [7, 7, 640], strides = [1, 1, 1]} : vector<9x7x640xf32> to vector<7x7x640xf32>
    %c0_11 = arith.constant 0 : index
    %c0_12 = arith.constant 0 : index
    %c0_13 = arith.constant 0 : index
    %7 = vector.load %arg2[%c0_11, %c0_12, %c0_13] : memref<3x3x640xf32, #tpu.memory_space<vmem>>, vector<1x1x640xf32>
    %8 = vector.shape_cast %7 : vector<1x1x640xf32> to vector<640xf32>
    %9 = vector.shape_cast %8 : vector<640xf32> to vector<1x1x640xf32>
    %10 = vector.broadcast %9 : vector<1x1x640xf32> to vector<7x7x640xf32>
    %11 = arith.mulf %6, %10 : vector<7x7x640xf32>
    %12 = arith.addf %4, %11 : vector<7x7x640xf32>
    %13 = vector.extract_strided_slice %5 {offsets = [1, 0, 0], sizes = [7, 7, 640], strides = [1, 1, 1]} : vector<9x7x640xf32> to vector<7x7x640xf32>
    %c1_14 = arith.constant 1 : index
    %c0_15 = arith.constant 0 : index
    %c0_16 = arith.constant 0 : index
    %14 = vector.load %arg2[%c1_14, %c0_15, %c0_16] : memref<3x3x640xf32, #tpu.memory_space<vmem>>, vector<1x1x640xf32>
    %15 = vector.shape_cast %14 : vector<1x1x640xf32> to vector<640xf32>
    %16 = vector.shape_cast %15 : vector<640xf32> to vector<1x1x640xf32>
    %17 = vector.broadcast %16 : vector<1x1x640xf32> to vector<7x7x640xf32>
    %18 = arith.mulf %13, %17 : vector<7x7x640xf32>
    %19 = arith.addf %12, %18 : vector<7x7x640xf32>
    %20 = vector.extract_strided_slice %5 {offsets = [2, 0, 0], sizes = [7, 7, 640], strides = [1, 1, 1]} : vector<9x7x640xf32> to vector<7x7x640xf32>
    %c2 = arith.constant 2 : index
    %c0_17 = arith.constant 0 : index
    %c0_18 = arith.constant 0 : index
    %21 = vector.load %arg2[%c2, %c0_17, %c0_18] : memref<3x3x640xf32, #tpu.memory_space<vmem>>, vector<1x1x640xf32>
    %22 = vector.shape_cast %21 : vector<1x1x640xf32> to vector<640xf32>
    %23 = vector.shape_cast %22 : vector<640xf32> to vector<1x1x640xf32>
    %24 = vector.broadcast %23 : vector<1x1x640xf32> to vector<7x7x640xf32>
    %25 = arith.mulf %20, %24 : vector<7x7x640xf32>
    %26 = arith.addf %19, %25 : vector<7x7x640xf32>
    %c0_19 = arith.constant 0 : index
    %c1_20 = arith.constant 1 : index
    %c0_21 = arith.constant 0 : index
    %27 = vector.load %arg4[%c0_19, %c1_20, %c0_21] : memref<9x9x640xf32, #tpu.memory_space<vmem>>, vector<9x7x640xf32>
    %28 = vector.extract_strided_slice %27 {offsets = [0, 0, 0], sizes = [7, 7, 640], strides = [1, 1, 1]} : vector<9x7x640xf32> to vector<7x7x640xf32>
    %c0_22 = arith.constant 0 : index
    %c1_23 = arith.constant 1 : index
    %c0_24 = arith.constant 0 : index
    %29 = vector.load %arg2[%c0_22, %c1_23, %c0_24] : memref<3x3x640xf32, #tpu.memory_space<vmem>>, vector<1x1x640xf32>
    %30 = vector.shape_cast %29 : vector<1x1x640xf32> to vector<640xf32>
    %31 = vector.shape_cast %30 : vector<640xf32> to vector<1x1x640xf32>
    %32 = vector.broadcast %31 : vector<1x1x640xf32> to vector<7x7x640xf32>
    %33 = arith.mulf %28, %32 : vector<7x7x640xf32>
    %34 = arith.addf %26, %33 : vector<7x7x640xf32>
    %35 = vector.extract_strided_slice %27 {offsets = [1, 0, 0], sizes = [7, 7, 640], strides = [1, 1, 1]} : vector<9x7x640xf32> to vector<7x7x640xf32>
    %c1_25 = arith.constant 1 : index
    %c1_26 = arith.constant 1 : index
    %c0_27 = arith.constant 0 : index
    %36 = vector.load %arg2[%c1_25, %c1_26, %c0_27] : memref<3x3x640xf32, #tpu.memory_space<vmem>>, vector<1x1x640xf32>
    %37 = vector.shape_cast %36 : vector<1x1x640xf32> to vector<640xf32>
    %38 = vector.shape_cast %37 : vector<640xf32> to vector<1x1x640xf32>
    %39 = vector.broadcast %38 : vector<1x1x640xf32> to vector<7x7x640xf32>
    %40 = arith.mulf %35, %39 : vector<7x7x640xf32>
    %41 = arith.addf %34, %40 : vector<7x7x640xf32>
    %42 = vector.extract_strided_slice %27 {offsets = [2, 0, 0], sizes = [7, 7, 640], strides = [1, 1, 1]} : vector<9x7x640xf32> to vector<7x7x640xf32>
    %c2_28 = arith.constant 2 : index
    %c1_29 = arith.constant 1 : index
    %c0_30 = arith.constant 0 : index
    %43 = vector.load %arg2[%c2_28, %c1_29, %c0_30] : memref<3x3x640xf32, #tpu.memory_space<vmem>>, vector<1x1x640xf32>
    %44 = vector.shape_cast %43 : vector<1x1x640xf32> to vector<640xf32>
    %45 = vector.shape_cast %44 : vector<640xf32> to vector<1x1x640xf32>
    %46 = vector.broadcast %45 : vector<1x1x640xf32> to vector<7x7x640xf32>
    %47 = arith.mulf %42, %46 : vector<7x7x640xf32>
    %48 = arith.addf %41, %47 : vector<7x7x640xf32>
    %c0_31 = arith.constant 0 : index
    %c2_32 = arith.constant 2 : index
    %c0_33 = arith.constant 0 : index
    %49 = vector.load %arg4[%c0_31, %c2_32, %c0_33] : memref<9x9x640xf32, #tpu.memory_space<vmem>>, vector<9x7x640xf32>
    %50 = vector.extract_strided_slice %49 {offsets = [0, 0, 0], sizes = [7, 7, 640], strides = [1, 1, 1]} : vector<9x7x640xf32> to vector<7x7x640xf32>
    %c0_34 = arith.constant 0 : index
    %c2_35 = arith.constant 2 : index
    %c0_36 = arith.constant 0 : index
    %51 = vector.load %arg2[%c0_34, %c2_35, %c0_36] : memref<3x3x640xf32, #tpu.memory_space<vmem>>, vector<1x1x640xf32>
    %52 = vector.shape_cast %51 : vector<1x1x640xf32> to vector<640xf32>
    %53 = vector.shape_cast %52 : vector<640xf32> to vector<1x1x640xf32>
    %54 = vector.broadcast %53 : vector<1x1x640xf32> to vector<7x7x640xf32>
    %55 = arith.mulf %50, %54 : vector<7x7x640xf32>
    %56 = arith.addf %48, %55 : vector<7x7x640xf32>
    %57 = vector.extract_strided_slice %49 {offsets = [1, 0, 0], sizes = [7, 7, 640], strides = [1, 1, 1]} : vector<9x7x640xf32> to vector<7x7x640xf32>
    %c1_37 = arith.constant 1 : index
    %c2_38 = arith.constant 2 : index
    %c0_39 = arith.constant 0 : index
    %58 = vector.load %arg2[%c1_37, %c2_38, %c0_39] : memref<3x3x640xf32, #tpu.memory_space<vmem>>, vector<1x1x640xf32>
    %59 = vector.shape_cast %58 : vector<1x1x640xf32> to vector<640xf32>
    %60 = vector.shape_cast %59 : vector<640xf32> to vector<1x1x640xf32>
    %61 = vector.broadcast %60 : vector<1x1x640xf32> to vector<7x7x640xf32>
    %62 = arith.mulf %57, %61 : vector<7x7x640xf32>
    %63 = arith.addf %56, %62 : vector<7x7x640xf32>
    %64 = vector.extract_strided_slice %49 {offsets = [2, 0, 0], sizes = [7, 7, 640], strides = [1, 1, 1]} : vector<9x7x640xf32> to vector<7x7x640xf32>
    %c2_40 = arith.constant 2 : index
    %c2_41 = arith.constant 2 : index
    %c0_42 = arith.constant 0 : index
    %65 = vector.load %arg2[%c2_40, %c2_41, %c0_42] : memref<3x3x640xf32, #tpu.memory_space<vmem>>, vector<1x1x640xf32>
    %66 = vector.shape_cast %65 : vector<1x1x640xf32> to vector<640xf32>
    %67 = vector.shape_cast %66 : vector<640xf32> to vector<1x1x640xf32>
    %68 = vector.broadcast %67 : vector<1x1x640xf32> to vector<7x7x640xf32>
    %69 = arith.mulf %64, %68 : vector<7x7x640xf32>
    %70 = arith.addf %63, %69 : vector<7x7x640xf32>
    %c0_43 = arith.constant 0 : index
    %c0_44 = arith.constant 0 : index
    %c0_45 = arith.constant 0 : index
    %71 = vector.load %arg3[%c0_43, %c0_44, %c0_45] : memref<7x7x640xf32, #tpu.memory_space<vmem>>, vector<7x7x640xf32>
    tpu.vector_store %arg3[%c0_43, %c0_44, %c0_45], %70 {strides = array<i32>} : memref<7x7x640xf32, #tpu.memory_space<vmem>>, vector<7x7x640xf32>,
    return
  }
  func.func @transform_0(%arg0: i32) -> (i32, i32, i32) {
    %c0_i32 = arith.constant 0 : i32
    %c0_i32_0 = arith.constant 0 : i32
    %c0_i32_1 = arith.constant 0 : i32
    return %c0_i32, %c0_i32_0, %arg0 : i32, i32, i32
  }
  func.func @transform_1(%arg0: i32) -> (i32, i32, i32) {
    %c0_i32 = arith.constant 0 : i32
    %c0_i32_0 = arith.constant 0 : i32
    %c0_i32_1 = arith.constant 0 : i32
    return %c0_i32, %c0_i32_0, %arg0 : i32, i32, i32
  }
  func.func @transform_2(%arg0: i32) -> (i32, i32, i32) {
    %c0_i32 = arith.constant 0 : i32
    %c0_i32_0 = arith.constant 0 : i32
    %c0_i32_1 = arith.constant 0 : i32
    return %c0_i32, %c0_i32_0, %arg0 : i32, i32, i32
  }
}

</mosaic_0001>

<llo_original>
// kernel: depthwise_conv3x3.1
$region0: #{depthwise_conv3x3.1}
  #allocation0 [shape = 'u32[]', space=smem, size = 0x4, offset = 0x4, fixed_abs, tag = 'smem constant byte address 0x4 - core index']
  #allocation1 [shape = 'u32[144,128]{1,0:T(1,128)}', space=vmem, size = 0x12000, scoped, tag = 'internal scratch']
  #allocation2 [shape = 'f32[9,9,640]{2,1,0:T(8,128)}', space=vmem, size = 0x5a000, scoped, tag = 'scratch operand']
  %s0 = inlined_call_operand.vmem [shape: f32[7,7,1920], index: 0, kind: input, shape index: {}]
  %s1 = inlined_call_operand.vmem [shape: f32[3,3,1920], index: 1, kind: input, shape index: {}]
  %s2 = inlined_call_operand.vmem [shape: f32[7,7,1920], index: 2, kind: output, shape index: {}]
  %s3 = sld [smem:[#allocation0]]
  $region109: #{depthwise_conv3x3.1} parent=0
    _
  %s5 = ssub.s32 1, %s3
  %s6 = scalar_select 0, %s5, %s3
  $region1: #{depthwise_conv3x3.1} parent=0
    #allocation3 [shape = 'u8[286720]{0}', space=vmem, size = 0x46000, scoped, tag = 'input window, operand 0']
    #allocation4 [shape = 'u8[61440]{0}', space=vmem, size = 0xf000, scoped, tag = 'input window, operand 1']
    #allocation5 [shape = 'u8[286720]{0}', space=vmem, size = 0x46000, scoped, tag = 'output window, operand 0']
    loop: start=0, step=1, limit=5
    $region2: #{depthwise_conv3x3.1} parent=1 // loop_pre_header
      _
    $region3: #{depthwise_conv3x3.1} parent=1 // loop_header
      %s8 = sphi 0, %s12
      %p9 = scmp.ge.s32.totalorder %s8, 5
      %s18 = sphi 0, %s20
      %s21 = sphi 0, %s18
      %s22 = sphi 0, %s21
      %s38 = sphi 0, %s22
      %s44 = sphi 0, %s46
      %s47 = sphi 0, %s44
      %s48 = sphi 0, %s47
      %s64 = sphi 0, %s48
      %s70 = sphi 0, %s72
      %s73 = sphi 0, %s70
      %s74 = sphi 0, %s73
      %s90 = sphi 0, %s74
    $region4: #{depthwise_conv3x3.1} parent=1 // loop_header_branch
      %11 = sbr.rel (%p9) target = $region8
    $region5: #{depthwise_conv3x3.1} parent=1 // loop_body
      %s13 = ssub.s32 %s8, 1
      %s14 = ssub.s32 %s8, 2
      %s15 = sadd.s32 %s8, 1
      %s16 = ssub.s32 %s8, %s15
      %p17 = scmp.eq.s32.totalorder %s16, 0
      %s19 = sadd.s32 %s18, 1
      %s20 = scalar_select %p17, %s18, %s19
      %p23 = pneg %p17
      %p24 = scmp.eq.s32.totalorder %s8, 2
      %p25 = por %p23, %p24
      %p26 = scmp.ne.s32.totalorder %s18, %s21
      %p27 = scmp.eq.s32.totalorder %s8, 0
      %p28 = por %p26, %p27
      %p29 = scmp.ne.s32.totalorder %s18, %s21
      %p30 = scmp.eq.s32.totalorder %s13, 2
      %p31 = por %p29, %p30
      %p32 = scmp.ne.s32.totalorder %s21, %s22
      %p33 = scmp.eq.s32.totalorder %s13, 0
      %p34 = por %p32, %p33
      %p35 = scmp.ne.s32.totalorder %s21, %s22
      %p36 = scmp.eq.s32.totalorder %s14, 2
      %p37 = por %p35, %p36
      %p39 = scmp.ne.s32.totalorder %s22, %s38
      %p40 = scmp.eq.s32.totalorder %s14, 0
      %p41 = por %p39, %p40
      %s42 = ssub.s32 %s8, %s15
      %p43 = scmp.eq.s32.totalorder %s42, 0
      %s45 = sadd.s32 %s44, 1
      %s46 = scalar_select %p43, %s44, %s45
      %p49 = pneg %p43
      %p50 = scmp.eq.s32.totalorder %s8, 2
      %p51 = por %p49, %p50
      %p52 = scmp.ne.s32.totalorder %s44, %s47
      %p53 = scmp.eq.s32.totalorder %s8, 0
      %p54 = por %p52, %p53
      %p55 = scmp.ne.s32.totalorder %s44, %s47
      %p56 = scmp.eq.s32.totalorder %s13, 2
      %p57 = por %p55, %p56
      %p58 = scmp.ne.s32.totalorder %s47, %s48
      %p59 = scmp.eq.s32.totalorder %s13, 0
      %p60 = por %p58, %p59
      %p61 = scmp.ne.s32.totalorder %s47, %s48
      %p62 = scmp.eq.s32.totalorder %s14, 2
      %p63 = por %p61, %p62
      %p65 = scmp.ne.s32.totalorder %s48, %s64
      %p66 = scmp.eq.s32.totalorder %s14, 0
      %p67 = por %p65, %p66
      %s68 = ssub.s32 %s8, %s15
      %p69 = scmp.eq.s32.totalorder %s68, 0
      %s71 = sadd.s32 %s70, 1
      %s72 = scalar_select %p69, %s70, %s71
      %p75 = pneg %p69
      %p76 = scmp.eq.s32.totalorder %s8, 2
      %p77 = por %p75, %p76
      %p78 = scmp.ne.s32.totalorder %s70, %s73
      %p79 = scmp.eq.s32.totalorder %s8, 0
      %p80 = por %p78, %p79
      %p81 = scmp.ne.s32.totalorder %s70, %s73
      %p82 = scmp.eq.s32.totalorder %s13, 2
      %p83 = por %p81, %p82
      %p84 = scmp.ne.s32.totalorder %s73, %s74
      %p85 = scmp.eq.s32.totalorder %s13, 0
      %p86 = por %p84, %p85
      %p87 = scmp.ne.s32.totalorder %s73, %s74
      %p88 = scmp.eq.s32.totalorder %s14, 2
      %p89 = por %p87, %p88
      %p91 = scmp.ne.s32.totalorder %s74, %s90
      %p92 = scmp.eq.s32.totalorder %s14, 0
      %p93 = por %p91, %p92
      %p94 = scmp.le.s32.totalorder 1, %s8
      %p95 = scmp.lt.s32.totalorder %s8, 4
      %p96 = pnand %p94, %p95
      %p97 = pneg %p96
      // Predicated region
      $region9: #{depthwise_conv3x3.1} parent=5 // pred_check
        _
      $region10: #{depthwise_conv3x3.1} parent=5 // pred_check_branch
        %99 = sbr.rel (%p96) target = $region12
      $region11: #{depthwise_conv3x3.1} parent=5 // pred_region
        %s100 = ssub.s32 %s8, 1
      $region12: #{depthwise_conv3x3.1} parent=5 // pred_fallthru
        _
      %p101 = scmp.lt.s32.totalorder %s8, 3
      // Predicated region
      $region13: #{depthwise_conv3x3.1} parent=5 // pred_check
        %p102 = pneg %p101
      $region14: #{depthwise_conv3x3.1} parent=5 // pred_check_branch
        %104 = sbr.rel (%p102) target = $region16
      $region15: #{depthwise_conv3x3.1} parent=5 // pred_region
        // Predicated region
        $region17: #{depthwise_conv3x3.1} parent=15 // pred_check
          %p105 = pneg %p28
        $region18: #{depthwise_conv3x3.1} parent=15 // pred_check_branch
          %107 = sbr.rel (%p105) target = $region20
        $region19: #{depthwise_conv3x3.1} parent=15 // pred_region
          %s108 = sand.u32 %s18, 1
          %s109 = sand.u32 %s18, 1
          %s110 = smul.addr %s109, 280
          %s111 = scalar_lea.vmem [#allocation3], %s110
          %s112 = smul.u32 5, %s8
          %s113 = smul.addr %s112, 8
          %s114 = scalar_lea.vmem %s0, %s113
          // Predicated region
          $region21: #{depthwise_conv3x3.1} parent=19 // pred_check
            _
          $region22: #{depthwise_conv3x3.1} parent=19 // pred_check_branch
            %116 = sbr.rel (0) target = $region24
          $region23: #{depthwise_conv3x3.1} parent=19 // pred_region
            // Predicated region
            $region25: #{depthwise_conv3x3.1} parent=23 // pred_check
              _
            $region26: #{depthwise_conv3x3.1} parent=23 // pred_check_branch
              %118 = sbr.rel (0) target = $region28
            $region27: #{depthwise_conv3x3.1} parent=23 // pred_region
              loop: start=0, step=1, limit=1
              $region29: #{depthwise_conv3x3.1} parent=27 // loop_pre_header
                _
              $region30: #{depthwise_conv3x3.1} parent=27 // loop_header
                %s120 = sphi 0, %s124
                %p121 = scmp.ge.s32.totalorder %s120, 1
                %s125 = sphi %s114, %s114
                %s126 = sphi %s111, %s111
              $region31: #{depthwise_conv3x3.1} parent=27 // loop_header_branch
                %123 = sbr.rel (%p121) target = $region35
              $region32: #{depthwise_conv3x3.1} parent=27 // loop_body
                %v127 = vld [vmem:[%s125] sm:$0xff]
                %128 = vst [vmem:[%s126] sm:$0xff] %v127
                %v129 = vld [vmem:[%s125 + $0x8] sm:$0xff]
                %130 = vst [vmem:[%s126 + $0x8] sm:$0xff] %v129
                %v131 = vld [vmem:[%s125 + $0x10] sm:$0xff]
                %132 = vst [vmem:[%s126 + $0x10] sm:$0xff] %v131
                %v133 = vld [vmem:[%s125 + $0x18] sm:$0xff]
                %134 = vst [vmem:[%s126 + $0x18] sm:$0xff] %v133
                %v135 = vld [vmem:[%s125 + $0x20] sm:$0xff]
                %136 = vst [vmem:[%s126 + $0x20] sm:$0xff] %v135
                %v137 = vld [vmem:[%s125 + $0x78] sm:$0xff]
                %138 = vst [vmem:[%s126 + $0x28] sm:$0xff] %v137
                %v139 = vld [vmem:[%s125 + $0x80] sm:$0xff]
                %140 = vst [vmem:[%s126 + $0x30] sm:$0xff] %v139
                %v141 = vld [vmem:[%s125 + $0x88] sm:$0xff]
                %142 = vst [vmem:[%s126 + $0x38] sm:$0xff] %v141
                %v143 = vld [vmem:[%s125 + $0x90] sm:$0xff]
                %144 = vst [vmem:[%s126 + $0x40] sm:$0xff] %v143
                %v145 = vld [vmem:[%s125 + $0x98] sm:$0xff]
                %146 = vst [vmem:[%s126 + $0x48] sm:$0xff] %v145
                %v147 = vld [vmem:[%s125 + $0xf0] sm:$0xff]
                %148 = vst [vmem:[%s126 + $0x50] sm:$0xff] %v147
                %v149 = vld [vmem:[%s125 + $0xf8] sm:$0xff]
                %150 = vst [vmem:[%s126 + $0x58] sm:$0xff] %v149
                %v151 = vld [vmem:[%s125 + $0x100] sm:$0xff]
                %152 = vst [vmem:[%s126 + $0x60] sm:$0xff] %v151
                %v153 = vld [vmem:[%s125 + $0x108] sm:$0xff]
                %154 = vst [vmem:[%s126 + $0x68] sm:$0xff] %v153
                %v155 = vld [vmem:[%s125 + $0x110] sm:$0xff]
                %156 = vst [vmem:[%s126 + $0x70] sm:$0xff] %v155
                %v157 = vld [vmem:[%s125 + $0x168] sm:$0xff]
                %158 = vst [vmem:[%s126 + $0x78] sm:$0xff] %v157
                %v159 = vld [vmem:[%s125 + $0x170] sm:$0xff]
                %160 = vst [vmem:[%s126 + $0x80] sm:$0xff] %v159
                %v161 = vld [vmem:[%s125 + $0x178] sm:$0xff]
                %162 = vst [vmem:[%s126 + $0x88] sm:$0xff] %v161
                %v163 = vld [vmem:[%s125 + $0x180] sm:$0xff]
                %164 = vst [vmem:[%s126 + $0x90] sm:$0xff] %v163
                %v165 = vld [vmem:[%s125 + $0x188] sm:$0xff]
                %166 = vst [vmem:[%s126 + $0x98] sm:$0xff] %v165
                %v167 = vld [vmem:[%s125 + $0x1e0] sm:$0xff]
                %168 = vst [vmem:[%s126 + $0xa0] sm:$0xff] %v167
                %v169 = vld [vmem:[%s125 + $0x1e8] sm:$0xff]
                %170 = vst [vmem:[%s126 + $0xa8] sm:$0xff] %v169
                %v171 = vld [vmem:[%s125 + $0x1f0] sm:$0xff]
                %172 = vst [vmem:[%s126 + $0xb0] sm:$0xff] %v171
                %v173 = vld [vmem:[%s125 + $0x1f8] sm:$0xff]
                %174 = vst [vmem:[%s126 + $0xb8] sm:$0xff] %v173
                %v175 = vld [vmem:[%s125 + $0x200] sm:$0xff]
                %176 = vst [vmem:[%s126 + $0xc0] sm:$0xff] %v175
                %v177 = vld [vmem:[%s125 + $0x258] sm:$0xff]
                %178 = vst [vmem:[%s126 + $0xc8] sm:$0xff] %v177
                %v179 = vld [vmem:[%s125 + $0x260] sm:$0xff]
                %180 = vst [vmem:[%s126 + $0xd0] sm:$0xff] %v179
                %v181 = vld [vmem:[%s125 + $0x268] sm:$0xff]
                %182 = vst [vmem:[%s126 + $0xd8] sm:$0xff] %v181
                %v183 = vld [vmem:[%s125 + $0x270] sm:$0xff]
                %184 = vst [vmem:[%s126 + $0xe0] sm:$0xff] %v183
                %v185 = vld [vmem:[%s125 + $0x278] sm:$0xff]
                %186 = vst [vmem:[%s126 + $0xe8] sm:$0xff] %v185
                %v187 = vld [vmem:[%s125 + $0x2d0] sm:$0xff]
                %188 = vst [vmem:[%s126 + $0xf0] sm:$0xff] %v187
                %v189 = vld [vmem:[%s125 + $0x2d8] sm:$0xff]
                %190 = vst [vmem:[%s126 + $0xf8] sm:$0xff] %v189
                %v191 = vld [vmem:[%s125 + $0x2e0] sm:$0xff]
                %192 = vst [vmem:[%s126 + $0x100] sm:$0xff] %v191
                %v193 = vld [vmem:[%s125 + $0x2e8] sm:$0xff]
                %194 = vst [vmem:[%s126 + $0x108] sm:$0xff] %v193
                %v195 = vld [vmem:[%s125 + $0x2f0] sm:$0xff]
                %196 = vst [vmem:[%s126 + $0x110] sm:$0xff] %v195
              $region33: #{depthwise_conv3x3.1} parent=27 // loop_footer
                %s124 = sadd.s32 1, %s120
              $region34: #{depthwise_conv3x3.1} parent=27 // loop_footer_branch
                %119 = sbr.rel target = $region30
              $region35: #{depthwise_conv3x3.1} parent=27 // loop_exit
                _
            $region28: #{depthwise_conv3x3.1} parent=23 // pred_fallthru
              _
            // Predicated region
            $region36: #{depthwise_conv3x3.1} parent=23 // pred_check
              _
            $region37: #{depthwise_conv3x3.1} parent=23 // pred_check_branch
              %198 = sbr.rel target = $region39
            $region38: #{depthwise_conv3x3.1} parent=23 // pred_region
              _
            $region39: #{depthwise_conv3x3.1} parent=23 // pred_fallthru
              _
          $region24: #{depthwise_conv3x3.1} parent=19 // pred_fallthru
            _
          %199 = vnop
        $region20: #{depthwise_conv3x3.1} parent=15 // pred_fallthru
          _
        // Predicated region
        $region40: #{depthwise_conv3x3.1} parent=15 // pred_check
          %p200 = pneg %p54
        $region41: #{depthwise_conv3x3.1} parent=15 // pred_check_branch
          %202 = sbr.rel (%p200) target = $region43
        $region42: #{depthwise_conv3x3.1} parent=15 // pred_region
          %s203 = sand.u32 %s44, 1
          %s204 = sand.u32 %s44, 1
          %s205 = smul.addr %s204, 60
          %s206 = scalar_lea.vmem [#allocation4], %s205
          %s207 = smul.u32 5, %s8
          %s208 = smul.addr %s207, 4
          %s209 = scalar_lea.vmem %s1, %s208
          // Predicated region
          $region44: #{depthwise_conv3x3.1} parent=42 // pred_check
            _
          $region45: #{depthwise_conv3x3.1} parent=42 // pred_check_branch
            %211 = sbr.rel (0) target = $region47
          $region46: #{depthwise_conv3x3.1} parent=42 // pred_region
            // Predicated region
            $region48: #{depthwise_conv3x3.1} parent=46 // pred_check
              _
            $region49: #{depthwise_conv3x3.1} parent=46 // pred_check_branch
              %213 = sbr.rel (0) target = $region51
            $region50: #{depthwise_conv3x3.1} parent=46 // pred_region
              %s214 = scalar_lea.vmem %s209, 16
              %s215 = scalar_lea.vmem %s206, 16 [#allocation4]
              loop: start=0, step=1, limit=1
              $region52: #{depthwise_conv3x3.1} parent=50 // loop_pre_header
                _
              $region53: #{depthwise_conv3x3.1} parent=50 // loop_header
                %s217 = sphi 0, %s221
                %p218 = scmp.ge.s32.totalorder %s217, 1
                %s222 = sphi %s209, %s209
                %s223 = sphi %s206, %s206
              $region54: #{depthwise_conv3x3.1} parent=50 // loop_header_branch
                %220 = sbr.rel (%p218) target = $region58
              $region55: #{depthwise_conv3x3.1} parent=50 // loop_body
                %v224 = vld [vmem:[%s222] sm:$0xff]
                %225 = vst [vmem:[%s223] sm:$0xff] %v224
                %v226 = vld [vmem:[%s222 + $0x8] sm:$0xff]
                %227 = vst [vmem:[%s223 + $0x8] sm:$0xff] %v226
                %v228 = vld [vmem:[%s222 + $0x3c] sm:$0xff]
                %229 = vst [vmem:[%s223 + $0x14] sm:$0xff] %v228
                %v230 = vld [vmem:[%s222 + $0x44] sm:$0xff]
                %231 = vst [vmem:[%s223 + $0x1c] sm:$0xff] %v230
                %v232 = vld [vmem:[%s222 + $0x78] sm:$0xff]
                %233 = vst [vmem:[%s223 + $0x28] sm:$0xff] %v232
                %v234 = vld [vmem:[%s222 + $0x80] sm:$0xff]
                %235 = vst [vmem:[%s223 + $0x30] sm:$0xff] %v234
              $region56: #{depthwise_conv3x3.1} parent=50 // loop_footer
                %s221 = sadd.s32 1, %s217
              $region57: #{depthwise_conv3x3.1} parent=50 // loop_footer_branch
                %216 = sbr.rel target = $region53
              $region58: #{depthwise_conv3x3.1} parent=50 // loop_exit
                _
              loop: start=0, step=1, limit=1
              $region59: #{depthwise_conv3x3.1} parent=50 // loop_pre_header
                _
              $region60: #{depthwise_conv3x3.1} parent=50 // loop_header
                %s238 = sphi 0, %s242
                %p239 = scmp.ge.s32.totalorder %s238, 1
                %s243 = sphi %s214, %s214
                %s244 = sphi %s215, %s215
              $region61: #{depthwise_conv3x3.1} parent=50 // loop_header_branch
                %241 = sbr.rel (%p239) target = $region65
              $region62: #{depthwise_conv3x3.1} parent=50 // loop_body
                %v245 = vld [vmem:[%s243] sm:$0xf]
                %246 = vst [vmem:[%s244] sm:$0xf] %v245
                %v247 = vld [vmem:[%s243 + $0x3c] sm:$0xf]
                %248 = vst [vmem:[%s244 + $0x14] sm:$0xf] %v247
                %v249 = vld [vmem:[%s243 + $0x78] sm:$0xf]
                %250 = vst [vmem:[%s244 + $0x28] sm:$0xf] %v249
              $region63: #{depthwise_conv3x3.1} parent=50 // loop_footer
                %s242 = sadd.s32 1, %s238
              $region64: #{depthwise_conv3x3.1} parent=50 // loop_footer_branch
                %237 = sbr.rel target = $region60
              $region65: #{depthwise_conv3x3.1} parent=50 // loop_exit
                _
            $region51: #{depthwise_conv3x3.1} parent=46 // pred_fallthru
              _
          $region47: #{depthwise_conv3x3.1} parent=42 // pred_fallthru
            _
          %251 = vnop
        $region43: #{depthwise_conv3x3.1} parent=15 // pred_fallthru
          _
      $region16: #{depthwise_conv3x3.1} parent=5 // pred_fallthru
        _
      %p252 = scmp.le.s32.totalorder 1, %s8
      %p253 = scmp.lt.s32.totalorder %s8, 4
      %p254 = pnand %p252, %p253
      %p255 = pneg %p254
      // Predicated region
      $region66: #{depthwise_conv3x3.1} parent=5 // pred_check
        _
      $region67: #{depthwise_conv3x3.1} parent=5 // pred_check_branch
        %257 = sbr.rel (%p254) target = $region69
      $region68: #{depthwise_conv3x3.1} parent=5 // pred_region
        %s258 = ssub.s32 %s8, 1
        %s259 = sand.u32 %s21, 1
        %s260 = sand.u32 %s21, 1
        %s261 = smul.addr %s260, 280
        %s262 = scalar_lea.vmem [#allocation3], %s261
        // Predicated region
        $region70: #{depthwise_conv3x3.1} parent=68 // pred_check
          %p263 = pneg %p34
        $region71: #{depthwise_conv3x3.1} parent=68 // pred_check_branch
          %265 = sbr.rel (%p263) target = $region73
        $region72: #{depthwise_conv3x3.1} parent=68 // pred_region
          _
        $region73: #{depthwise_conv3x3.1} parent=68 // pred_fallthru
          _
        %s266 = sand.u32 %s47, 1
        %s267 = sand.u32 %s47, 1
        %s268 = smul.addr %s267, 60
        %s269 = scalar_lea.vmem [#allocation4], %s268
        // Predicated region
        $region74: #{depthwise_conv3x3.1} parent=68 // pred_check
          %p270 = pneg %p60
        $region75: #{depthwise_conv3x3.1} parent=68 // pred_check_branch
          %272 = sbr.rel (%p270) target = $region77
        $region76: #{depthwise_conv3x3.1} parent=68 // pred_region
          _
        $region77: #{depthwise_conv3x3.1} parent=68 // pred_fallthru
          _
        %s273 = sand.u32 %s21, 1
        %s274 = sand.u32 %s21, 1
        %s275 = smul.addr %s274, 280
        %s276 = scalar_lea.vmem [#allocation3], %s275
        %p277 = pneg %p34
        %p278 = pneg %p31
        %s279 = sand.u32 %s47, 1
        %s280 = sand.u32 %s47, 1
        %s281 = smul.addr %s280, 60
        %s282 = scalar_lea.vmem [#allocation4], %s281
        %p283 = pneg %p60
        %p284 = pneg %p57
        %p285 = pneg %p86
        %p286 = pneg %p83
        %s287 = sand.u32 %s73, 1
        %s288 = sand.u32 %s73, 1
        %s289 = smul.addr %s288, 280
        %s290 = scalar_lea.vmem [#allocation5], %s289
        %s291 = smul.u32 5, %s13
        %s292 = smul.u32 5, %s13
        %s293 = smul.u32 5, %s13
        %294 = vst [vmem:[#allocation2] sm:$0xff] 0.0
        %295 = vst [vmem:[#allocation2 + $0x8] sm:$0xff] 0.0
        %296 = vst [vmem:[#allocation2 + $0x10] sm:$0xff] 0.0
        %297 = vst [vmem:[#allocation2 + $0x18] sm:$0xff] 0.0
        %298 = vst [vmem:[#allocation2 + $0x20] sm:$0xff] 0.0
        %299 = vst [vmem:[#allocation2 + $0x28] sm:$0x1] 0.0
        %300 = vst [vmem:[#allocation2 + $0x30] sm:$0x1] 0.0
        %301 = vst [vmem:[#allocation2 + $0x38] sm:$0x1] 0.0
        %302 = vst [vmem:[#allocation2 + $0x40] sm:$0x1] 0.0
        %303 = vst [vmem:[#allocation2 + $0x48] sm:$0x1] 0.0
        %304 = vst [vmem:[#allocation2 + $0x50] sm:$0xff] 0.0
        %305 = vst [vmem:[#allocation2 + $0x58] sm:$0xff] 0.0
        %306 = vst [vmem:[#allocation2 + $0x60] sm:$0xff] 0.0
        %307 = vst [vmem:[#allocation2 + $0x68] sm:$0xff] 0.0
        %308 = vst [vmem:[#allocation2 + $0x70] sm:$0xff] 0.0
        %309 = vst [vmem:[#allocation2 + $0x78] sm:$0x1] 0.0
        %310 = vst [vmem:[#allocation2 + $0x80] sm:$0x1] 0.0
        %311 = vst [vmem:[#allocation2 + $0x88] sm:$0x1] 0.0
        %312 = vst [vmem:[#allocation2 + $0x90] sm:$0x1] 0.0
        %313 = vst [vmem:[#allocation2 + $0x98] sm:$0x1] 0.0
        %314 = vst [vmem:[#allocation2 + $0xa0] sm:$0xff] 0.0
        %315 = vst [vmem:[#allocation2 + $0xa8] sm:$0xff] 0.0
        %316 = vst [vmem:[#allocation2 + $0xb0] sm:$0xff] 0.0
        %317 = vst [vmem:[#allocation2 + $0xb8] sm:$0xff] 0.0
        %318 = vst [vmem:[#allocation2 + $0xc0] sm:$0xff] 0.0
        %319 = vst [vmem:[#allocation2 + $0xc8] sm:$0x1] 0.0
        %320 = vst [vmem:[#allocation2 + $0xd0] sm:$0x1] 0.0
        %321 = vst [vmem:[#allocation2 + $0xd8] sm:$0x1] 0.0
        %322 = vst [vmem:[#allocation2 + $0xe0] sm:$0x1] 0.0
        %323 = vst [vmem:[#allocation2 + $0xe8] sm:$0x1] 0.0
        %324 = vst [vmem:[#allocation2 + $0xf0] sm:$0xff] 0.0
        %325 = vst [vmem:[#allocation2 + $0xf8] sm:$0xff] 0.0
        %326 = vst [vmem:[#allocation2 + $0x100] sm:$0xff] 0.0
        %327 = vst [vmem:[#allocation2 + $0x108] sm:$0xff] 0.0
        %328 = vst [vmem:[#allocation2 + $0x110] sm:$0xff] 0.0
        %329 = vst [vmem:[#allocation2 + $0x118] sm:$0x1] 0.0
        %330 = vst [vmem:[#allocation2 + $0x120] sm:$0x1] 0.0
        %331 = vst [vmem:[#allocation2 + $0x128] sm:$0x1] 0.0
        %332 = vst [vmem:[#allocation2 + $0x130] sm:$0x1] 0.0
        %333 = vst [vmem:[#allocation2 + $0x138] sm:$0x1] 0.0
        %334 = vst [vmem:[#allocation2 + $0x140] sm:$0xff] 0.0
        %335 = vst [vmem:[#allocation2 + $0x148] sm:$0xff] 0.0
        %336 = vst [vmem:[#allocation2 + $0x150] sm:$0xff] 0.0
        %337 = vst [vmem:[#allocation2 + $0x158] sm:$0xff] 0.0
        %338 = vst [vmem:[#allocation2 + $0x160] sm:$0xff] 0.0
        %339 = vst [vmem:[#allocation2 + $0x168] sm:$0x1] 0.0
        %340 = vst [vmem:[#allocation2 + $0x170] sm:$0x1] 0.0
        %341 = vst [vmem:[#allocation2 + $0x178] sm:$0x1] 0.0
        %342 = vst [vmem:[#allocation2 + $0x180] sm:$0x1] 0.0
        %343 = vst [vmem:[#allocation2 + $0x188] sm:$0x1] 0.0
        %344 = vst [vmem:[#allocation2 + $0x190] sm:$0xff] 0.0
        %345 = vst [vmem:[#allocation2 + $0x198] sm:$0xff] 0.0
        %346 = vst [vmem:[#allocation2 + $0x1a0] sm:$0xff] 0.0
        %347 = vst [vmem:[#allocation2 + $0x1a8] sm:$0xff] 0.0
        %348 = vst [vmem:[#allocation2 + $0x1b0] sm:$0xff] 0.0
        %349 = vst [vmem:[#allocation2 + $0x1b8] sm:$0x1] 0.0
        %350 = vst [vmem:[#allocation2 + $0x1c0] sm:$0x1] 0.0
        %351 = vst [vmem:[#allocation2 + $0x1c8] sm:$0x1] 0.0
        %352 = vst [vmem:[#allocation2 + $0x1d0] sm:$0x1] 0.0
        %353 = vst [vmem:[#allocation2 + $0x1d8] sm:$0x1] 0.0
        %354 = vst [vmem:[#allocation2 + $0x1e0] sm:$0xff] 0.0
        %355 = vst [vmem:[#allocation2 + $0x1e8] sm:$0xff] 0.0
        %356 = vst [vmem:[#allocation2 + $0x1f0] sm:$0xff] 0.0
        %357 = vst [vmem:[#allocation2 + $0x1f8] sm:$0xff] 0.0
        %358 = vst [vmem:[#allocation2 + $0x200] sm:$0xff] 0.0
        %359 = vst [vmem:[#allocation2 + $0x208] sm:$0x1] 0.0
        %360 = vst [vmem:[#allocation2 + $0x210] sm:$0x1] 0.0
        %361 = vst [vmem:[#allocation2 + $0x218] sm:$0x1] 0.0
        %362 = vst [vmem:[#allocation2 + $0x220] sm:$0x1] 0.0
        %363 = vst [vmem:[#allocation2 + $0x228] sm:$0x1] 0.0
        %364 = vst [vmem:[#allocation2 + $0x230] sm:$0xff] 0.0
        %365 = vst [vmem:[#allocation2 + $0x238] sm:$0xff] 0.0
        %366 = vst [vmem:[#allocation2 + $0x240] sm:$0xff] 0.0
        %367 = vst [vmem:[#allocation2 + $0x248] sm:$0xff] 0.0
        %368 = vst [vmem:[#allocation2 + $0x250] sm:$0xff] 0.0
        %369 = vst [vmem:[#allocation2 + $0x258] sm:$0x1] 0.0
        %370 = vst [vmem:[#allocation2 + $0x260] sm:$0x1] 0.0
        %371 = vst [vmem:[#allocation2 + $0x268] sm:$0x1] 0.0
        %372 = vst [vmem:[#allocation2 + $0x270] sm:$0x1] 0.0
        %373 = vst [vmem:[#allocation2 + $0x278] sm:$0x1] 0.0
        %374 = vst [vmem:[#allocation2 + $0x280] sm:$0xff] 0.0
        %375 = vst [vmem:[#allocation2 + $0x288] sm:$0xff] 0.0
        %376 = vst [vmem:[#allocation2 + $0x290] sm:$0xff] 0.0
        %377 = vst [vmem:[#allocation2 + $0x298] sm:$0xff] 0.0
        %378 = vst [vmem:[#allocation2 + $0x2a0] sm:$0xff] 0.0
        %379 = vst [vmem:[#allocation2 + $0x2a8] sm:$0x1] 0.0
        %380 = vst [vmem:[#allocation2 + $0x2b0] sm:$0x1] 0.0
        %381 = vst [vmem:[#allocation2 + $0x2b8] sm:$0x1] 0.0
        %382 = vst [vmem:[#allocation2 + $0x2c0] sm:$0x1] 0.0
        %383 = vst [vmem:[#allocation2 + $0x2c8] sm:$0x1] 0.0
        %v384 = vld [vmem:[%s262] sm:$0x7f]
        %v385 = vld [vmem:[%s262 + $0x8] sm:$0x7f]
        %v386 = vld [vmem:[%s262 + $0x10] sm:$0x7f]
        %v387 = vld [vmem:[%s262 + $0x18] sm:$0x7f]
        %v388 = vld [vmem:[%s262 + $0x20] sm:$0x7f]
        %v389 = vld [vmem:[%s262 + $0x28] sm:$0x7f]
        %v390 = vld [vmem:[%s262 + $0x30] sm:$0x7f]
        %v391 = vld [vmem:[%s262 + $0x38] sm:$0x7f]
        %v392 = vld [vmem:[%s262 + $0x40] sm:$0x7f]
        %v393 = vld [vmem:[%s262 + $0x48] sm:$0x7f]
        %v394 = vld [vmem:[%s262 + $0x50] sm:$0x7f]
        %v395 = vld [vmem:[%s262 + $0x58] sm:$0x7f]
        %v396 = vld [vmem:[%s262 + $0x60] sm:$0x7f]
        %v397 = vld [vmem:[%s262 + $0x68] sm:$0x7f]
        %v398 = vld [vmem:[%s262 + $0x70] sm:$0x7f]
        %v399 = vld [vmem:[%s262 + $0x78] sm:$0x7f]
        %v400 = vld [vmem:[%s262 + $0x80] sm:$0x7f]
        %v401 = vld [vmem:[%s262 + $0x88] sm:$0x7f]
        %v402 = vld [vmem:[%s262 + $0x90] sm:$0x7f]
        %v403 = vld [vmem:[%s262 + $0x98] sm:$0x7f]
        %v404 = vld [vmem:[%s262 + $0xa0] sm:$0x7f]
        %v405 = vld [vmem:[%s262 + $0xa8] sm:$0x7f]
        %v406 = vld [vmem:[%s262 + $0xb0] sm:$0x7f]
        %v407 = vld [vmem:[%s262 + $0xb8] sm:$0x7f]
        %v408 = vld [vmem:[%s262 + $0xc0] sm:$0x7f]
        %v409 = vld [vmem:[%s262 + $0xc8] sm:$0x7f]
        %v410 = vld [vmem:[%s262 + $0xd0] sm:$0x7f]
        %v411 = vld [vmem:[%s262 + $0xd8] sm:$0x7f]
        %v412 = vld [vmem:[%s262 + $0xe0] sm:$0x7f]
        %v413 = vld [vmem:[%s262 + $0xe8] sm:$0x7f]
        %v414 = vld [vmem:[%s262 + $0xf0] sm:$0x7f]
        %v415 = vld [vmem:[%s262 + $0xf8] sm:$0x7f]
        %v416 = vld [vmem:[%s262 + $0x100] sm:$0x7f]
        %v417 = vld [vmem:[%s262 + $0x108] sm:$0x7f]
        %v418 = vld [vmem:[%s262 + $0x110] sm:$0x7f]
        %v454 = vrot.slane %v384, 7
        %v455 = vrot.slane %v385, 7
        %v456 = vrot.slane %v386, 7
        %v457 = vrot.slane %v387, 7
        %v458 = vrot.slane %v388, 7
        %v459 = vrot.slane %v389, 7
        %v460 = vrot.slane %v390, 7
        %v461 = vrot.slane %v391, 7
        %v462 = vrot.slane %v392, 7
        %v463 = vrot.slane %v393, 7
        %v464 = vrot.slane %v394, 7
        %v465 = vrot.slane %v395, 7
        %v466 = vrot.slane %v396, 7
        %v467 = vrot.slane %v397, 7
        %v468 = vrot.slane %v398, 7
        %v469 = vrot.slane %v399, 7
        %v470 = vrot.slane %v400, 7
        %v471 = vrot.slane %v401, 7
        %v472 = vrot.slane %v402, 7
        %v473 = vrot.slane %v403, 7
        %v474 = vrot.slane %v404, 7
        %v475 = vrot.slane %v405, 7
        %v476 = vrot.slane %v406, 7
        %v477 = vrot.slane %v407, 7
        %v478 = vrot.slane %v408, 7
        %v479 = vrot.slane %v409, 7
        %v480 = vrot.slane %v410, 7
        %v481 = vrot.slane %v411, 7
        %v482 = vrot.slane %v412, 7
        %v483 = vrot.slane %v413, 7
        %v484 = vrot.slane %v414, 7
        %v485 = vrot.slane %v415, 7
        %v486 = vrot.slane %v416, 7
        %v487 = vrot.slane %v417, 7
        %v488 = vrot.slane %v418, 7
        %s524 = scalar_lea.vmem [#allocation2], 80
        %525 = vst [vmem:[%s524] sm:$0xfe] %v454
        %526 = vst [vmem:[%s524 + $0x8] sm:$0xfe] %v455
        %527 = vst [vmem:[%s524 + $0x10] sm:$0xfe] %v456
        %528 = vst [vmem:[%s524 + $0x18] sm:$0xfe] %v457
        %529 = vst [vmem:[%s524 + $0x20] sm:$0xfe] %v458
        %530 = vst [vmem:[%s524 + $0x50] sm:$0xfe] %v459
        %531 = vst [vmem:[%s524 + $0x58] sm:$0xfe] %v460
        %532 = vst [vmem:[%s524 + $0x60] sm:$0xfe] %v461
        %533 = vst [vmem:[%s524 + $0x68] sm:$0xfe] %v462
        %534 = vst [vmem:[%s524 + $0x70] sm:$0xfe] %v463
        %535 = vst [vmem:[%s524 + $0xa0] sm:$0xfe] %v464
        %536 = vst [vmem:[%s524 + $0xa8] sm:$0xfe] %v465
        %537 = vst [vmem:[%s524 + $0xb0] sm:$0xfe] %v466
        %538 = vst [vmem:[%s524 + $0xb8] sm:$0xfe] %v467
        %539 = vst [vmem:[%s524 + $0xc0] sm:$0xfe] %v468
        %540 = vst [vmem:[%s524 + $0xf0] sm:$0xfe] %v469
        %541 = vst [vmem:[%s524 + $0xf8] sm:$0xfe] %v470
        %542 = vst [vmem:[%s524 + $0x100] sm:$0xfe] %v471
        %543 = vst [vmem:[%s524 + $0x108] sm:$0xfe] %v472
        %544 = vst [vmem:[%s524 + $0x110] sm:$0xfe] %v473
        %545 = vst [vmem:[%s524 + $0x140] sm:$0xfe] %v474
        %546 = vst [vmem:[%s524 + $0x148] sm:$0xfe] %v475
        %547 = vst [vmem:[%s524 + $0x150] sm:$0xfe] %v476
        %548 = vst [vmem:[%s524 + $0x158] sm:$0xfe] %v477
        %549 = vst [vmem:[%s524 + $0x160] sm:$0xfe] %v478
        %550 = vst [vmem:[%s524 + $0x190] sm:$0xfe] %v479
        %551 = vst [vmem:[%s524 + $0x198] sm:$0xfe] %v480
        %552 = vst [vmem:[%s524 + $0x1a0] sm:$0xfe] %v481
        %553 = vst [vmem:[%s524 + $0x1a8] sm:$0xfe] %v482
        %554 = vst [vmem:[%s524 + $0x1b0] sm:$0xfe] %v483
        %555 = vst [vmem:[%s524 + $0x1e0] sm:$0xfe] %v484
        %556 = vst [vmem:[%s524 + $0x1e8] sm:$0xfe] %v485
        %557 = vst [vmem:[%s524 + $0x1f0] sm:$0xfe] %v486
        %558 = vst [vmem:[%s524 + $0x1f8] sm:$0xfe] %v487
        %559 = vst [vmem:[%s524 + $0x200] sm:$0xfe] %v488
        %v560 = vld [vmem:[#allocation2] sm:$0x7f]
        %v561 = vld [vmem:[#allocation2 + $0x8] sm:$0x7f]
        %v562 = vld [vmem:[#allocation2 + $0x10] sm:$0x7f]
        %v563 = vld [vmem:[#allocation2 + $0x18] sm:$0x7f]
        %v564 = vld [vmem:[#allocation2 + $0x20] sm:$0x7f]
        %v565 = vld [vmem:[#allocation2 + $0x50] sm:$0x7f]
        %v566 = vld [vmem:[#allocation2 + $0x58] sm:$0x7f]
        %v567 = vld [vmem:[#allocation2 + $0x60] sm:$0x7f]
        %v568 = vld [vmem:[#allocation2 + $0x68] sm:$0x7f]
        %v569 = vld [vmem:[#allocation2 + $0x70] sm:$0x7f]
        %v570 = vld [vmem:[#allocation2 + $0xa0] sm:$0x7f]
        %v571 = vld [vmem:[#allocation2 + $0xa8] sm:$0x7f]
        %v572 = vld [vmem:[#allocation2 + $0xb0] sm:$0x7f]
        %v573 = vld [vmem:[#allocation2 + $0xb8] sm:$0x7f]
        %v574 = vld [vmem:[#allocation2 + $0xc0] sm:$0x7f]
        %v575 = vld [vmem:[#allocation2 + $0xf0] sm:$0x7f]
        %v576 = vld [vmem:[#allocation2 + $0xf8] sm:$0x7f]
        %v577 = vld [vmem:[#allocation2 + $0x100] sm:$0x7f]
        %v578 = vld [vmem:[#allocation2 + $0x108] sm:$0x7f]
        %v579 = vld [vmem:[#allocation2 + $0x110] sm:$0x7f]
        %v580 = vld [vmem:[#allocation2 + $0x140] sm:$0x7f]
        %v581 = vld [vmem:[#allocation2 + $0x148] sm:$0x7f]
        %v582 = vld [vmem:[#allocation2 + $0x150] sm:$0x7f]
        %v583 = vld [vmem:[#allocation2 + $0x158] sm:$0x7f]
        %v584 = vld [vmem:[#allocation2 + $0x160] sm:$0x7f]
        %v585 = vld [vmem:[#allocation2 + $0x190] sm:$0x7f]
        %v586 = vld [vmem:[#allocation2 + $0x198] sm:$0x7f]
        %v587 = vld [vmem:[#allocation2 + $0x1a0] sm:$0x7f]
        %v588 = vld [vmem:[#allocation2 + $0x1a8] sm:$0x7f]
        %v589 = vld [vmem:[#allocation2 + $0x1b0] sm:$0x7f]
        %v590 = vld [vmem:[#allocation2 + $0x1e0] sm:$0x7f]
        %v591 = vld [vmem:[#allocation2 + $0x1e8] sm:$0x7f]
        %v592 = vld [vmem:[#allocation2 + $0x1f0] sm:$0x7f]
        %v593 = vld [vmem:[#allocation2 + $0x1f8] sm:$0x7f]
        %v594 = vld [vmem:[#allocation2 + $0x200] sm:$0x7f]
        %v595 = vld [vmem:[#allocation2 + $0x230] sm:$0x7f]
        %v596 = vld [vmem:[#allocation2 + $0x238] sm:$0x7f]
        %v597 = vld [vmem:[#allocation2 + $0x240] sm:$0x7f]
        %v598 = vld [vmem:[#allocation2 + $0x248] sm:$0x7f]
        %v599 = vld [vmem:[#allocation2 + $0x250] sm:$0x7f]
        %v600 = vld [vmem:[#allocation2 + $0x280] sm:$0x7f]
        %v601 = vld [vmem:[#allocation2 + $0x288] sm:$0x7f]
        %v602 = vld [vmem:[#allocation2 + $0x290] sm:$0x7f]
        %v603 = vld [vmem:[#allocation2 + $0x298] sm:$0x7f]
        %v604 = vld [vmem:[#allocation2 + $0x2a0] sm:$0x7f]
        %v605 = vld [vmem:[%s269] ss:$4 sm:$0x1f]
        %v607 = vlaneseq
        %v608 = vshrl.u32 %v607, 7
        %v609 = vsub.s32 0, %v608
        %v610 = vrot.slane %v605, %v609
        %v611 = vlaneseq
        %v612 = vshrl.u32 %v611, 7
        %v613 = vsub.s32 1, %v612
        %v614 = vrot.slane %v605, %v613
        %v615 = vlaneseq
        %v616 = vshrl.u32 %v615, 7
        %v617 = vsub.s32 2, %v616
        %v618 = vrot.slane %v605, %v617
        %v619 = vlaneseq
        %v620 = vshrl.u32 %v619, 7
        %v621 = vsub.s32 3, %v620
        %v622 = vrot.slane %v605, %v621
        %v623 = vlaneseq
        %v624 = vshrl.u32 %v623, 7
        %v625 = vsub.s32 4, %v624
        %v626 = vrot.slane %v605, %v625
        %v632 = vmul.f32 %v560, %v610
        %v633 = vmul.f32 %v561, %v614
        %v634 = vmul.f32 %v562, %v618
        %v635 = vmul.f32 %v563, %v622
        %v636 = vmul.f32 %v564, %v626
        %v637 = vmul.f32 %v565, %v610
        %v638 = vmul.f32 %v566, %v614
        %v639 = vmul.f32 %v567, %v618
        %v640 = vmul.f32 %v568, %v622
        %v641 = vmul.f32 %v569, %v626
        %v642 = vmul.f32 %v570, %v610
        %v643 = vmul.f32 %v571, %v614
        %v644 = vmul.f32 %v572, %v618
        %v645 = vmul.f32 %v573, %v622
        %v646 = vmul.f32 %v574, %v626
        %v647 = vmul.f32 %v575, %v610
        %v648 = vmul.f32 %v576, %v614
        %v649 = vmul.f32 %v577, %v618
        %v650 = vmul.f32 %v578, %v622
        %v651 = vmul.f32 %v579, %v626
        %v652 = vmul.f32 %v580, %v610
        %v653 = vmul.f32 %v581, %v614
        %v654 = vmul.f32 %v582, %v618
        %v655 = vmul.f32 %v583, %v622
        %v656 = vmul.f32 %v584, %v626
        %v657 = vmul.f32 %v585, %v610
        %v658 = vmul.f32 %v586, %v614
        %v659 = vmul.f32 %v587, %v618
        %v660 = vmul.f32 %v588, %v622
        %v661 = vmul.f32 %v589, %v626
        %v662 = vmul.f32 %v590, %v610
        %v663 = vmul.f32 %v591, %v614
        %v664 = vmul.f32 %v592, %v618
        %v665 = vmul.f32 %v593, %v622
        %v666 = vmul.f32 %v594, %v626
        %v667 = vadd.f32 %v632, 0.0
        %v668 = vadd.f32 %v633, 0.0
        %v669 = vadd.f32 %v634, 0.0
        %v670 = vadd.f32 %v635, 0.0
        %v671 = vadd.f32 %v636, 0.0
        %v672 = vadd.f32 %v637, 0.0
        %v673 = vadd.f32 %v638, 0.0
        %v674 = vadd.f32 %v639, 0.0
        %v675 = vadd.f32 %v640, 0.0
        %v676 = vadd.f32 %v641, 0.0
        %v677 = vadd.f32 %v642, 0.0
        %v678 = vadd.f32 %v643, 0.0
        %v679 = vadd.f32 %v644, 0.0
        %v680 = vadd.f32 %v645, 0.0
        %v681 = vadd.f32 %v646, 0.0
        %v682 = vadd.f32 %v647, 0.0
        %v683 = vadd.f32 %v648, 0.0
        %v684 = vadd.f32 %v649, 0.0
        %v685 = vadd.f32 %v650, 0.0
        %v686 = vadd.f32 %v651, 0.0
        %v687 = vadd.f32 %v652, 0.0
        %v688 = vadd.f32 %v653, 0.0
        %v689 = vadd.f32 %v654, 0.0
        %v690 = vadd.f32 %v655, 0.0
        %v691 = vadd.f32 %v656, 0.0
        %v692 = vadd.f32 %v657, 0.0
        %v693 = vadd.f32 %v658, 0.0
        %v694 = vadd.f32 %v659, 0.0
        %v695 = vadd.f32 %v660, 0.0
        %v696 = vadd.f32 %v661, 0.0
        %v697 = vadd.f32 %v662, 0.0
        %v698 = vadd.f32 %v663, 0.0
        %v699 = vadd.f32 %v664, 0.0
        %v700 = vadd.f32 %v665, 0.0
        %v701 = vadd.f32 %v666, 0.0
        %s702 = scalar_lea.vmem %s269, 20 [#allocation4]
        %v703 = vld [vmem:[%s702] ss:$4 sm:$0x1f]
        %v705 = vlaneseq
        %v706 = vshrl.u32 %v705, 7
        %v707 = vsub.s32 0, %v706
        %v708 = vrot.slane %v703, %v707
        %v709 = vlaneseq
        %v710 = vshrl.u32 %v709, 7
        %v711 = vsub.s32 1, %v710
        %v712 = vrot.slane %v703, %v711
        %v713 = vlaneseq
        %v714 = vshrl.u32 %v713, 7
        %v715 = vsub.s32 2, %v714
        %v716 = vrot.slane %v703, %v715
        %v717 = vlaneseq
        %v718 = vshrl.u32 %v717, 7
        %v719 = vsub.s32 3, %v718
        %v720 = vrot.slane %v703, %v719
        %v721 = vlaneseq
        %v722 = vshrl.u32 %v721, 7
        %v723 = vsub.s32 4, %v722
        %v724 = vrot.slane %v703, %v723
        %v730 = vmul.f32 %v565, %v708
        %v731 = vmul.f32 %v566, %v712
        %v732 = vmul.f32 %v567, %v716
        %v733 = vmul.f32 %v568, %v720
        %v734 = vmul.f32 %v569, %v724
        %v735 = vmul.f32 %v570, %v708
        %v736 = vmul.f32 %v571, %v712
        %v737 = vmul.f32 %v572, %v716
        %v738 = vmul.f32 %v573, %v720
        %v739 = vmul.f32 %v574, %v724
        %v740 = vmul.f32 %v575, %v708
        %v741 = vmul.f32 %v576, %v712
        %v742 = vmul.f32 %v577, %v716
        %v743 = vmul.f32 %v578, %v720
        %v744 = vmul.f32 %v579, %v724
        %v745 = vmul.f32 %v580, %v708
        %v746 = vmul.f32 %v581, %v712
        %v747 = vmul.f32 %v582, %v716
        %v748 = vmul.f32 %v583, %v720
        %v749 = vmul.f32 %v584, %v724
        %v750 = vmul.f32 %v585, %v708
        %v751 = vmul.f32 %v586, %v712
        %v752 = vmul.f32 %v587, %v716
        %v753 = vmul.f32 %v588, %v720
        %v754 = vmul.f32 %v589, %v724
        %v755 = vmul.f32 %v590, %v708
        %v756 = vmul.f32 %v591, %v712
        %v757 = vmul.f32 %v592, %v716
        %v758 = vmul.f32 %v593, %v720
        %v759 = vmul.f32 %v594, %v724
        %v760 = vmul.f32 %v595, %v708
        %v761 = vmul.f32 %v596, %v712
        %v762 = vmul.f32 %v597, %v716
        %v763 = vmul.f32 %v598, %v720
        %v764 = vmul.f32 %v599, %v724
        %v765 = vadd.f32 %v667, %v730
        %v766 = vadd.f32 %v668, %v731
        %v767 = vadd.f32 %v669, %v732
        %v768 = vadd.f32 %v670, %v733
        %v769 = vadd.f32 %v671, %v734
        %v770 = vadd.f32 %v672, %v735
        %v771 = vadd.f32 %v673, %v736
        %v772 = vadd.f32 %v674, %v737
        %v773 = vadd.f32 %v675, %v738
        %v774 = vadd.f32 %v676, %v739
        %v775 = vadd.f32 %v677, %v740
        %v776 = vadd.f32 %v678, %v741
        %v777 = vadd.f32 %v679, %v742
        %v778 = vadd.f32 %v680, %v743
        %v779 = vadd.f32 %v681, %v744
        %v780 = vadd.f32 %v682, %v745
        %v781 = vadd.f32 %v683, %v746
        %v782 = vadd.f32 %v684, %v747
        %v783 = vadd.f32 %v685, %v748
        %v784 = vadd.f32 %v686, %v749
        %v785 = vadd.f32 %v687, %v750
        %v786 = vadd.f32 %v688, %v751
        %v787 = vadd.f32 %v689, %v752
        %v788 = vadd.f32 %v690, %v753
        %v789 = vadd.f32 %v691, %v754
        %v790 = vadd.f32 %v692, %v755
        %v791 = vadd.f32 %v693, %v756
        %v792 = vadd.f32 %v694, %v757
        %v793 = vadd.f32 %v695, %v758
        %v794 = vadd.f32 %v696, %v759
        %v795 = vadd.f32 %v697, %v760
        %v796 = vadd.f32 %v698, %v761
        %v797 = vadd.f32 %v699, %v762
        %v798 = vadd.f32 %v700, %v763
        %v799 = vadd.f32 %v701, %v764
        %s800 = scalar_lea.vmem %s269, 40 [#allocation4]
        %v801 = vld [vmem:[%s800] ss:$4 sm:$0x1f]
        %v803 = vlaneseq
        %v804 = vshrl.u32 %v803, 7
        %v805 = vsub.s32 0, %v804
        %v806 = vrot.slane %v801, %v805
        %v807 = vlaneseq
        %v808 = vshrl.u32 %v807, 7
        %v809 = vsub.s32 1, %v808
        %v810 = vrot.slane %v801, %v809
        %v811 = vlaneseq
        %v812 = vshrl.u32 %v811, 7
        %v813 = vsub.s32 2, %v812
        %v814 = vrot.slane %v801, %v813
        %v815 = vlaneseq
        %v816 = vshrl.u32 %v815, 7
        %v817 = vsub.s32 3, %v816
        %v818 = vrot.slane %v801, %v817
        %v819 = vlaneseq
        %v820 = vshrl.u32 %v819, 7
        %v821 = vsub.s32 4, %v820
        %v822 = vrot.slane %v801, %v821
        %v828 = vmul.f32 %v570, %v806
        %v829 = vmul.f32 %v571, %v810
        %v830 = vmul.f32 %v572, %v814
        %v831 = vmul.f32 %v573, %v818
        %v832 = vmul.f32 %v574, %v822
        %v833 = vmul.f32 %v575, %v806
        %v834 = vmul.f32 %v576, %v810
        %v835 = vmul.f32 %v577, %v814
        %v836 = vmul.f32 %v578, %v818
        %v837 = vmul.f32 %v579, %v822
        %v838 = vmul.f32 %v580, %v806
        %v839 = vmul.f32 %v581, %v810
        %v840 = vmul.f32 %v582, %v814
        %v841 = vmul.f32 %v583, %v818
        %v842 = vmul.f32 %v584, %v822
        %v843 = vmul.f32 %v585, %v806
        %v844 = vmul.f32 %v586, %v810
        %v845 = vmul.f32 %v587, %v814
        %v846 = vmul.f32 %v588, %v818
        %v847 = vmul.f32 %v589, %v822
        %v848 = vmul.f32 %v590, %v806
        %v849 = vmul.f32 %v591, %v810
        %v850 = vmul.f32 %v592, %v814
        %v851 = vmul.f32 %v593, %v818
        %v852 = vmul.f32 %v594, %v822
        %v853 = vmul.f32 %v595, %v806
        %v854 = vmul.f32 %v596, %v810
        %v855 = vmul.f32 %v597, %v814
        %v856 = vmul.f32 %v598, %v818
        %v857 = vmul.f32 %v599, %v822
        %v858 = vmul.f32 %v600, %v806
        %v859 = vmul.f32 %v601, %v810
        %v860 = vmul.f32 %v602, %v814
        %v861 = vmul.f32 %v603, %v818
        %v862 = vmul.f32 %v604, %v822
        %v863 = vadd.f32 %v765, %v828
        %v864 = vadd.f32 %v766, %v829
        %v865 = vadd.f32 %v767, %v830
        %v866 = vadd.f32 %v768, %v831
        %v867 = vadd.f32 %v769, %v832
        %v868 = vadd.f32 %v770, %v833
        %v869 = vadd.f32 %v771, %v834
        %v870 = vadd.f32 %v772, %v835
        %v871 = vadd.f32 %v773, %v836
        %v872 = vadd.f32 %v774, %v837
        %v873 = vadd.f32 %v775, %v838
        %v874 = vadd.f32 %v776, %v839
        %v875 = vadd.f32 %v777, %v840
        %v876 = vadd.f32 %v778, %v841
        %v877 = vadd.f32 %v779, %v842
        %v878 = vadd.f32 %v780, %v843
        %v879 = vadd.f32 %v781, %v844
        %v880 = vadd.f32 %v782, %v845
        %v881 = vadd.f32 %v783, %v846
        %v882 = vadd.f32 %v784, %v847
        %v883 = vadd.f32 %v785, %v848
        %v884 = vadd.f32 %v786, %v849
        %v885 = vadd.f32 %v787, %v850
        %v886 = vadd.f32 %v788, %v851
        %v887 = vadd.f32 %v789, %v852
        %v888 = vadd.f32 %v790, %v853
        %v889 = vadd.f32 %v791, %v854
        %v890 = vadd.f32 %v792, %v855
        %v891 = vadd.f32 %v793, %v856
        %v892 = vadd.f32 %v794, %v857
        %v893 = vadd.f32 %v795, %v858
        %v894 = vadd.f32 %v796, %v859
        %v895 = vadd.f32 %v797, %v860
        %v896 = vadd.f32 %v798, %v861
        %v897 = vadd.f32 %v799, %v862
        %v898 = vld [vmem:[#allocation2] sm:$0xfe]
        %v899 = vld [vmem:[#allocation2 + $0x8] sm:$0xfe]
        %v900 = vld [vmem:[#allocation2 + $0x10] sm:$0xfe]
        %v901 = vld [vmem:[#allocation2 + $0x18] sm:$0xfe]
        %v902 = vld [vmem:[#allocation2 + $0x20] sm:$0xfe]
        %v903 = vld [vmem:[#allocation2 + $0x50] sm:$0xfe]
        %v904 = vld [vmem:[#allocation2 + $0x58] sm:$0xfe]
        %v905 = vld [vmem:[#allocation2 + $0x60] sm:$0xfe]
        %v906 = vld [vmem:[#allocation2 + $0x68] sm:$0xfe]
        %v907 = vld [vmem:[#allocation2 + $0x70] sm:$0xfe]
        %v908 = vld [vmem:[#allocation2 + $0xa0] sm:$0xfe]
        %v909 = vld [vmem:[#allocation2 + $0xa8] sm:$0xfe]
        %v910 = vld [vmem:[#allocation2 + $0xb0] sm:$0xfe]
        %v911 = vld [vmem:[#allocation2 + $0xb8] sm:$0xfe]
        %v912 = vld [vmem:[#allocation2 + $0xc0] sm:$0xfe]
        %v913 = vld [vmem:[#allocation2 + $0xf0] sm:$0xfe]
        %v914 = vld [vmem:[#allocation2 + $0xf8] sm:$0xfe]
        %v915 = vld [vmem:[#allocation2 + $0x100] sm:$0xfe]
        %v916 = vld [vmem:[#allocation2 + $0x108] sm:$0xfe]
        %v917 = vld [vmem:[#allocation2 + $0x110] sm:$0xfe]
        %v918 = vld [vmem:[#allocation2 + $0x140] sm:$0xfe]
        %v919 = vld [vmem:[#allocation2 + $0x148] sm:$0xfe]
        %v920 = vld [vmem:[#allocation2 + $0x150] sm:$0xfe]
        %v921 = vld [vmem:[#allocation2 + $0x158] sm:$0xfe]
        %v922 = vld [vmem:[#allocation2 + $0x160] sm:$0xfe]
        %v923 = vld [vmem:[#allocation2 + $0x190] sm:$0xfe]
        %v924 = vld [vmem:[#allocation2 + $0x198] sm:$0xfe]
        %v925 = vld [vmem:[#allocation2 + $0x1a0] sm:$0xfe]
        %v926 = vld [vmem:[#allocation2 + $0x1a8] sm:$0xfe]
        %v927 = vld [vmem:[#allocation2 + $0x1b0] sm:$0xfe]
        %v928 = vld [vmem:[#allocation2 + $0x1e0] sm:$0xfe]
        %v929 = vld [vmem:[#allocation2 + $0x1e8] sm:$0xfe]
        %v930 = vld [vmem:[#allocation2 + $0x1f0] sm:$0xfe]
        %v931 = vld [vmem:[#allocation2 + $0x1f8] sm:$0xfe]
        %v932 = vld [vmem:[#allocation2 + $0x200] sm:$0xfe]
        %v933 = vld [vmem:[#allocation2 + $0x230] sm:$0xfe]
        %v934 = vld [vmem:[#allocation2 + $0x238] sm:$0xfe]
        %v935 = vld [vmem:[#allocation2 + $0x240] sm:$0xfe]
        %v936 = vld [vmem:[#allocation2 + $0x248] sm:$0xfe]
        %v937 = vld [vmem:[#allocation2 + $0x250] sm:$0xfe]
        %v938 = vld [vmem:[#allocation2 + $0x280] sm:$0xfe]
        %v939 = vld [vmem:[#allocation2 + $0x288] sm:$0xfe]
        %v940 = vld [vmem:[#allocation2 + $0x290] sm:$0xfe]
        %v941 = vld [vmem:[#allocation2 + $0x298] sm:$0xfe]
        %v942 = vld [vmem:[#allocation2 + $0x2a0] sm:$0xfe]
        %s943 = scalar_lea.vmem %s269, 1 [#allocation4]
        %v944 = vld [vmem:[%s943] ss:$4 sm:$0x1f]
        %v946 = vlaneseq
        %v947 = vshrl.u32 %v946, 7
        %v948 = vsub.s32 0, %v947
        %v949 = vrot.slane %v944, %v948
        %v950 = vlaneseq
        %v951 = vshrl.u32 %v950, 7
        %v952 = vsub.s32 1, %v951
        %v953 = vrot.slane %v944, %v952
        %v954 = vlaneseq
        %v955 = vshrl.u32 %v954, 7
        %v956 = vsub.s32 2, %v955
        %v957 = vrot.slane %v944, %v956
        %v958 = vlaneseq
        %v959 = vshrl.u32 %v958, 7
        %v960 = vsub.s32 3, %v959
        %v961 = vrot.slane %v944, %v960
        %v962 = vlaneseq
        %v963 = vshrl.u32 %v962, 7
        %v964 = vsub.s32 4, %v963
        %v965 = vrot.slane %v944, %v964
        %v971 = vmul.f32 %v898, %v949
        %v972 = vmul.f32 %v899, %v953
        %v973 = vmul.f32 %v900, %v957
        %v974 = vmul.f32 %v901, %v961
        %v975 = vmul.f32 %v902, %v965
        %v976 = vmul.f32 %v903, %v949
        %v977 = vmul.f32 %v904, %v953
        %v978 = vmul.f32 %v905, %v957
        %v979 = vmul.f32 %v906, %v961
        %v980 = vmul.f32 %v907, %v965
        %v981 = vmul.f32 %v908, %v949
        %v982 = vmul.f32 %v909, %v953
        %v983 = vmul.f32 %v910, %v957
        %v984 = vmul.f32 %v911, %v961
        %v985 = vmul.f32 %v912, %v965
        %v986 = vmul.f32 %v913, %v949
        %v987 = vmul.f32 %v914, %v953
        %v988 = vmul.f32 %v915, %v957
        %v989 = vmul.f32 %v916, %v961
        %v990 = vmul.f32 %v917, %v965
        %v991 = vmul.f32 %v918, %v949
        %v992 = vmul.f32 %v919, %v953
        %v993 = vmul.f32 %v920, %v957
        %v994 = vmul.f32 %v921, %v961
        %v995 = vmul.f32 %v922, %v965
        %v996 = vmul.f32 %v923, %v949
        %v997 = vmul.f32 %v924, %v953
        %v998 = vmul.f32 %v925, %v957
        %v999 = vmul.f32 %v926, %v961
        %v1000 = vmul.f32 %v927, %v965
        %v1001 = vmul.f32 %v928, %v949
        %v1002 = vmul.f32 %v929, %v953
        %v1003 = vmul.f32 %v930, %v957
        %v1004 = vmul.f32 %v931, %v961
        %v1005 = vmul.f32 %v932, %v965
        %v1041 = vrot.slane %v971, 1
        %v1042 = vrot.slane %v972, 1
        %v1043 = vrot.slane %v973, 1
        %v1044 = vrot.slane %v974, 1
        %v1045 = vrot.slane %v975, 1
        %v1046 = vrot.slane %v976, 1
        %v1047 = vrot.slane %v977, 1
        %v1048 = vrot.slane %v978, 1
        %v1049 = vrot.slane %v979, 1
        %v1050 = vrot.slane %v980, 1
        %v1051 = vrot.slane %v981, 1
        %v1052 = vrot.slane %v982, 1
        %v1053 = vrot.slane %v983, 1
        %v1054 = vrot.slane %v984, 1
        %v1055 = vrot.slane %v985, 1
        %v1056 = vrot.slane %v986, 1
        %v1057 = vrot.slane %v987, 1
        %v1058 = vrot.slane %v988, 1
        %v1059 = vrot.slane %v989, 1
        %v1060 = vrot.slane %v990, 1
        %v1061 = vrot.slane %v991, 1
        %v1062 = vrot.slane %v992, 1
        %v1063 = vrot.slane %v993, 1
        %v1064 = vrot.slane %v994, 1
        %v1065 = vrot.slane %v995, 1
        %v1066 = vrot.slane %v996, 1
        %v1067 = vrot.slane %v997, 1
        %v1068 = vrot.slane %v998, 1
        %v1069 = vrot.slane %v999, 1
        %v1070 = vrot.slane %v1000, 1
        %v1071 = vrot.slane %v1001, 1
        %v1072 = vrot.slane %v1002, 1
        %v1073 = vrot.slane %v1003, 1
        %v1074 = vrot.slane %v1004, 1
        %v1075 = vrot.slane %v1005, 1
        %v1111 = vadd.f32 %v863, %v1041
        %v1112 = vadd.f32 %v864, %v1042
        %v1113 = vadd.f32 %v865, %v1043
        %v1114 = vadd.f32 %v866, %v1044
        %v1115 = vadd.f32 %v867, %v1045
        %v1116 = vadd.f32 %v868, %v1046
        %v1117 = vadd.f32 %v869, %v1047
        %v1118 = vadd.f32 %v870, %v1048
        %v1119 = vadd.f32 %v871, %v1049
        %v1120 = vadd.f32 %v872, %v1050
        %v1121 = vadd.f32 %v873, %v1051
        %v1122 = vadd.f32 %v874, %v1052
        %v1123 = vadd.f32 %v875, %v1053
        %v1124 = vadd.f32 %v876, %v1054
        %v1125 = vadd.f32 %v877, %v1055
        %v1126 = vadd.f32 %v878, %v1056
        %v1127 = vadd.f32 %v879, %v1057
        %v1128 = vadd.f32 %v880, %v1058
        %v1129 = vadd.f32 %v881, %v1059
        %v1130 = vadd.f32 %v882, %v1060
        %v1131 = vadd.f32 %v883, %v1061
        %v1132 = vadd.f32 %v884, %v1062
        %v1133 = vadd.f32 %v885, %v1063
        %v1134 = vadd.f32 %v886, %v1064
        %v1135 = vadd.f32 %v887, %v1065
        %v1136 = vadd.f32 %v888, %v1066
        %v1137 = vadd.f32 %v889, %v1067
        %v1138 = vadd.f32 %v890, %v1068
        %v1139 = vadd.f32 %v891, %v1069
        %v1140 = vadd.f32 %v892, %v1070
        %v1141 = vadd.f32 %v893, %v1071
        %v1142 = vadd.f32 %v894, %v1072
        %v1143 = vadd.f32 %v895, %v1073
        %v1144 = vadd.f32 %v896, %v1074
        %v1145 = vadd.f32 %v897, %v1075
        %s1146 = scalar_lea.vmem %s702, 1 [#allocation4]
        %v1147 = vld [vmem:[%s1146] ss:$4 sm:$0x1f]
        %v1149 = vlaneseq
        %v1150 = vshrl.u32 %v1149, 7
        %v1151 = vsub.s32 0, %v1150
        %v1152 = vrot.slane %v1147, %v1151
        %v1153 = vlaneseq
        %v1154 = vshrl.u32 %v1153, 7
        %v1155 = vsub.s32 1, %v1154
        %v1156 = vrot.slane %v1147, %v1155
        %v1157 = vlaneseq
        %v1158 = vshrl.u32 %v1157, 7
        %v1159 = vsub.s32 2, %v1158
        %v1160 = vrot.slane %v1147, %v1159
        %v1161 = vlaneseq
        %v1162 = vshrl.u32 %v1161, 7
        %v1163 = vsub.s32 3, %v1162
        %v1164 = vrot.slane %v1147, %v1163
        %v1165 = vlaneseq
        %v1166 = vshrl.u32 %v1165, 7
        %v1167 = vsub.s32 4, %v1166
        %v1168 = vrot.slane %v1147, %v1167
        %v1174 = vmul.f32 %v903, %v1152
        %v1175 = vmul.f32 %v904, %v1156
        %v1176 = vmul.f32 %v905, %v1160
        %v1177 = vmul.f32 %v906, %v1164
        %v1178 = vmul.f32 %v907, %v1168
        %v1179 = vmul.f32 %v908, %v1152
        %v1180 = vmul.f32 %v909, %v1156
        %v1181 = vmul.f32 %v910, %v1160
        %v1182 = vmul.f32 %v911, %v1164
        %v1183 = vmul.f32 %v912, %v1168
        %v1184 = vmul.f32 %v913, %v1152
        %v1185 = vmul.f32 %v914, %v1156
        %v1186 = vmul.f32 %v915, %v1160
        %v1187 = vmul.f32 %v916, %v1164
        %v1188 = vmul.f32 %v917, %v1168
        %v1189 = vmul.f32 %v918, %v1152
        %v1190 = vmul.f32 %v919, %v1156
        %v1191 = vmul.f32 %v920, %v1160
        %v1192 = vmul.f32 %v921, %v1164
        %v1193 = vmul.f32 %v922, %v1168
        %v1194 = vmul.f32 %v923, %v1152
        %v1195 = vmul.f32 %v924, %v1156
        %v1196 = vmul.f32 %v925, %v1160
        %v1197 = vmul.f32 %v926, %v1164
        %v1198 = vmul.f32 %v927, %v1168
        %v1199 = vmul.f32 %v928, %v1152
        %v1200 = vmul.f32 %v929, %v1156
        %v1201 = vmul.f32 %v930, %v1160
        %v1202 = vmul.f32 %v931, %v1164
        %v1203 = vmul.f32 %v932, %v1168
        %v1204 = vmul.f32 %v933, %v1152
        %v1205 = vmul.f32 %v934, %v1156
        %v1206 = vmul.f32 %v935, %v1160
        %v1207 = vmul.f32 %v936, %v1164
        %v1208 = vmul.f32 %v937, %v1168
        %v1244 = vrot.slane %v1174, 1
        %v1245 = vrot.slane %v1175, 1
        %v1246 = vrot.slane %v1176, 1
        %v1247 = vrot.slane %v1177, 1
        %v1248 = vrot.slane %v1178, 1
        %v1249 = vrot.slane %v1179, 1
        %v1250 = vrot.slane %v1180, 1
        %v1251 = vrot.slane %v1181, 1
        %v1252 = vrot.slane %v1182, 1
        %v1253 = vrot.slane %v1183, 1
        %v1254 = vrot.slane %v1184, 1
        %v1255 = vrot.slane %v1185, 1
        %v1256 = vrot.slane %v1186, 1
        %v1257 = vrot.slane %v1187, 1
        %v1258 = vrot.slane %v1188, 1
        %v1259 = vrot.slane %v1189, 1
        %v1260 = vrot.slane %v1190, 1
        %v1261 = vrot.slane %v1191, 1
        %v1262 = vrot.slane %v1192, 1
        %v1263 = vrot.slane %v1193, 1
        %v1264 = vrot.slane %v1194, 1
        %v1265 = vrot.slane %v1195, 1
        %v1266 = vrot.slane %v1196, 1
        %v1267 = vrot.slane %v1197, 1
        %v1268 = vrot.slane %v1198, 1
        %v1269 = vrot.slane %v1199, 1
        %v1270 = vrot.slane %v1200, 1
        %v1271 = vrot.slane %v1201, 1
        %v1272 = vrot.slane %v1202, 1
        %v1273 = vrot.slane %v1203, 1
        %v1274 = vrot.slane %v1204, 1
        %v1275 = vrot.slane %v1205, 1
        %v1276 = vrot.slane %v1206, 1
        %v1277 = vrot.slane %v1207, 1
        %v1278 = vrot.slane %v1208, 1
        %v1314 = vadd.f32 %v1111, %v1244
        %v1315 = vadd.f32 %v1112, %v1245
        %v1316 = vadd.f32 %v1113, %v1246
        %v1317 = vadd.f32 %v1114, %v1247
        %v1318 = vadd.f32 %v1115, %v1248
        %v1319 = vadd.f32 %v1116, %v1249
        %v1320 = vadd.f32 %v1117, %v1250
        %v1321 = vadd.f32 %v1118, %v1251
        %v1322 = vadd.f32 %v1119, %v1252
        %v1323 = vadd.f32 %v1120, %v1253
        %v1324 = vadd.f32 %v1121, %v1254
        %v1325 = vadd.f32 %v1122, %v1255
        %v1326 = vadd.f32 %v1123, %v1256
        %v1327 = vadd.f32 %v1124, %v1257
        %v1328 = vadd.f32 %v1125, %v1258
        %v1329 = vadd.f32 %v1126, %v1259
        %v1330 = vadd.f32 %v1127, %v1260
        %v1331 = vadd.f32 %v1128, %v1261
        %v1332 = vadd.f32 %v1129, %v1262
        %v1333 = vadd.f32 %v1130, %v1263
        %v1334 = vadd.f32 %v1131, %v1264
        %v1335 = vadd.f32 %v1132, %v1265
        %v1336 = vadd.f32 %v1133, %v1266
        %v1337 = vadd.f32 %v1134, %v1267
        %v1338 = vadd.f32 %v1135, %v1268
        %v1339 = vadd.f32 %v1136, %v1269
        %v1340 = vadd.f32 %v1137, %v1270
        %v1341 = vadd.f32 %v1138, %v1271
        %v1342 = vadd.f32 %v1139, %v1272
        %v1343 = vadd.f32 %v1140, %v1273
        %v1344 = vadd.f32 %v1141, %v1274
        %v1345 = vadd.f32 %v1142, %v1275
        %v1346 = vadd.f32 %v1143, %v1276
        %v1347 = vadd.f32 %v1144, %v1277
        %v1348 = vadd.f32 %v1145, %v1278
        %s1349 = scalar_lea.vmem %s800, 1 [#allocation4]
        %v1350 = vld [vmem:[%s1349] ss:$4 sm:$0x1f]
        %v1352 = vlaneseq
        %v1353 = vshrl.u32 %v1352, 7
        %v1354 = vsub.s32 0, %v1353
        %v1355 = vrot.slane %v1350, %v1354
        %v1356 = vlaneseq
        %v1357 = vshrl.u32 %v1356, 7
        %v1358 = vsub.s32 1, %v1357
        %v1359 = vrot.slane %v1350, %v1358
        %v1360 = vlaneseq
        %v1361 = vshrl.u32 %v1360, 7
        %v1362 = vsub.s32 2, %v1361
        %v1363 = vrot.slane %v1350, %v1362
        %v1364 = vlaneseq
        %v1365 = vshrl.u32 %v1364, 7
        %v1366 = vsub.s32 3, %v1365
        %v1367 = vrot.slane %v1350, %v1366
        %v1368 = vlaneseq
        %v1369 = vshrl.u32 %v1368, 7
        %v1370 = vsub.s32 4, %v1369
        %v1371 = vrot.slane %v1350, %v1370
        %v1377 = vmul.f32 %v908, %v1355
        %v1378 = vmul.f32 %v909, %v1359
        %v1379 = vmul.f32 %v910, %v1363
        %v1380 = vmul.f32 %v911, %v1367
        %v1381 = vmul.f32 %v912, %v1371
        %v1382 = vmul.f32 %v913, %v1355
        %v1383 = vmul.f32 %v914, %v1359
        %v1384 = vmul.f32 %v915, %v1363
        %v1385 = vmul.f32 %v916, %v1367
        %v1386 = vmul.f32 %v917, %v1371
        %v1387 = vmul.f32 %v918, %v1355
        %v1388 = vmul.f32 %v919, %v1359
        %v1389 = vmul.f32 %v920, %v1363
        %v1390 = vmul.f32 %v921, %v1367
        %v1391 = vmul.f32 %v922, %v1371
        %v1392 = vmul.f32 %v923, %v1355
        %v1393 = vmul.f32 %v924, %v1359
        %v1394 = vmul.f32 %v925, %v1363
        %v1395 = vmul.f32 %v926, %v1367
        %v1396 = vmul.f32 %v927, %v1371
        %v1397 = vmul.f32 %v928, %v1355
        %v1398 = vmul.f32 %v929, %v1359
        %v1399 = vmul.f32 %v930, %v1363
        %v1400 = vmul.f32 %v931, %v1367
        %v1401 = vmul.f32 %v932, %v1371
        %v1402 = vmul.f32 %v933, %v1355
        %v1403 = vmul.f32 %v934, %v1359
        %v1404 = vmul.f32 %v935, %v1363
        %v1405 = vmul.f32 %v936, %v1367
        %v1406 = vmul.f32 %v937, %v1371
        %v1407 = vmul.f32 %v938, %v1355
        %v1408 = vmul.f32 %v939, %v1359
        %v1409 = vmul.f32 %v940, %v1363
        %v1410 = vmul.f32 %v941, %v1367
        %v1411 = vmul.f32 %v942, %v1371
        %v1447 = vrot.slane %v1377, 1
        %v1448 = vrot.slane %v1378, 1
        %v1449 = vrot.slane %v1379, 1
        %v1450 = vrot.slane %v1380, 1
        %v1451 = vrot.slane %v1381, 1
        %v1452 = vrot.slane %v1382, 1
        %v1453 = vrot.slane %v1383, 1
        %v1454 = vrot.slane %v1384, 1
        %v1455 = vrot.slane %v1385, 1
        %v1456 = vrot.slane %v1386, 1
        %v1457 = vrot.slane %v1387, 1
        %v1458 = vrot.slane %v1388, 1
        %v1459 = vrot.slane %v1389, 1
        %v1460 = vrot.slane %v1390, 1
        %v1461 = vrot.slane %v1391, 1
        %v1462 = vrot.slane %v1392, 1
        %v1463 = vrot.slane %v1393, 1
        %v1464 = vrot.slane %v1394, 1
        %v1465 = vrot.slane %v1395, 1
        %v1466 = vrot.slane %v1396, 1
        %v1467 = vrot.slane %v1397, 1
        %v1468 = vrot.slane %v1398, 1
        %v1469 = vrot.slane %v1399, 1
        %v1470 = vrot.slane %v1400, 1
        %v1471 = vrot.slane %v1401, 1
        %v1472 = vrot.slane %v1402, 1
        %v1473 = vrot.slane %v1403, 1
        %v1474 = vrot.slane %v1404, 1
        %v1475 = vrot.slane %v1405, 1
        %v1476 = vrot.slane %v1406, 1
        %v1477 = vrot.slane %v1407, 1
        %v1478 = vrot.slane %v1408, 1
        %v1479 = vrot.slane %v1409, 1
        %v1480 = vrot.slane %v1410, 1
        %v1481 = vrot.slane %v1411, 1
        %v1517 = vadd.f32 %v1314, %v1447
        %v1518 = vadd.f32 %v1315, %v1448
        %v1519 = vadd.f32 %v1316, %v1449
        %v1520 = vadd.f32 %v1317, %v1450
        %v1521 = vadd.f32 %v1318, %v1451
        %v1522 = vadd.f32 %v1319, %v1452
        %v1523 = vadd.f32 %v1320, %v1453
        %v1524 = vadd.f32 %v1321, %v1454
        %v1525 = vadd.f32 %v1322, %v1455
        %v1526 = vadd.f32 %v1323, %v1456
        %v1527 = vadd.f32 %v1324, %v1457
        %v1528 = vadd.f32 %v1325, %v1458
        %v1529 = vadd.f32 %v1326, %v1459
        %v1530 = vadd.f32 %v1327, %v1460
        %v1531 = vadd.f32 %v1328, %v1461
        %v1532 = vadd.f32 %v1329, %v1462
        %v1533 = vadd.f32 %v1330, %v1463
        %v1534 = vadd.f32 %v1331, %v1464
        %v1535 = vadd.f32 %v1332, %v1465
        %v1536 = vadd.f32 %v1333, %v1466
        %v1537 = vadd.f32 %v1334, %v1467
        %v1538 = vadd.f32 %v1335, %v1468
        %v1539 = vadd.f32 %v1336, %v1469
        %v1540 = vadd.f32 %v1337, %v1470
        %v1541 = vadd.f32 %v1338, %v1471
        %v1542 = vadd.f32 %v1339, %v1472
        %v1543 = vadd.f32 %v1340, %v1473
        %v1544 = vadd.f32 %v1341, %v1474
        %v1545 = vadd.f32 %v1342, %v1475
        %v1546 = vadd.f32 %v1343, %v1476
        %v1547 = vadd.f32 %v1344, %v1477
        %v1548 = vadd.f32 %v1345, %v1478
        %v1549 = vadd.f32 %v1346, %v1479
        %v1550 = vadd.f32 %v1347, %v1480
        %v1551 = vadd.f32 %v1348, %v1481
        %v1552 = vld [vmem:[#allocation2] sm:$0xfc]
        %v1553 = vld [vmem:[#allocation2 + $0x8] sm:$0xfc]
        %v1554 = vld [vmem:[#allocation2 + $0x10] sm:$0xfc]
        %v1555 = vld [vmem:[#allocation2 + $0x18] sm:$0xfc]
        %v1556 = vld [vmem:[#allocation2 + $0x20] sm:$0xfc]
        %v1557 = vld [vmem:[#allocation2 + $0x28] sm:$0x1]
        %v1558 = vld [vmem:[#allocation2 + $0x30] sm:$0x1]
        %v1559 = vld [vmem:[#allocation2 + $0x38] sm:$0x1]
        %v1560 = vld [vmem:[#allocation2 + $0x40] sm:$0x1]
        %v1561 = vld [vmem:[#allocation2 + $0x48] sm:$0x1]
        %v1562 = vld [vmem:[#allocation2 + $0x50] sm:$0xfc]
        %v1563 = vld [vmem:[#allocation2 + $0x58] sm:$0xfc]
        %v1564 = vld [vmem:[#allocation2 + $0x60] sm:$0xfc]
        %v1565 = vld [vmem:[#allocation2 + $0x68] sm:$0xfc]
        %v1566 = vld [vmem:[#allocation2 + $0x70] sm:$0xfc]
        %v1567 = vld [vmem:[#allocation2 + $0x78] sm:$0x1]
        %v1568 = vld [vmem:[#allocation2 + $0x80] sm:$0x1]
        %v1569 = vld [vmem:[#allocation2 + $0x88] sm:$0x1]
        %v1570 = vld [vmem:[#allocation2 + $0x90] sm:$0x1]
        %v1571 = vld [vmem:[#allocation2 + $0x98] sm:$0x1]
        %v1572 = vld [vmem:[#allocation2 + $0xa0] sm:$0xfc]
        %v1573 = vld [vmem:[#allocation2 + $0xa8] sm:$0xfc]
        %v1574 = vld [vmem:[#allocation2 + $0xb0] sm:$0xfc]
        %v1575 = vld [vmem:[#allocation2 + $0xb8] sm:$0xfc]
        %v1576 = vld [vmem:[#allocation2 + $0xc0] sm:$0xfc]
        %v1577 = vld [vmem:[#allocation2 + $0xc8] sm:$0x1]
        %v1578 = vld [vmem:[#allocation2 + $0xd0] sm:$0x1]
        %v1579 = vld [vmem:[#allocation2 + $0xd8] sm:$0x1]
        %v1580 = vld [vmem:[#allocation2 + $0xe0] sm:$0x1]
        %v1581 = vld [vmem:[#allocation2 + $0xe8] sm:$0x1]
        %v1582 = vld [vmem:[#allocation2 + $0xf0] sm:$0xfc]
        %v1583 = vld [vmem:[#allocation2 + $0xf8] sm:$0xfc]
        %v1584 = vld [vmem:[#allocation2 + $0x100] sm:$0xfc]
        %v1585 = vld [vmem:[#allocation2 + $0x108] sm:$0xfc]
        %v1586 = vld [vmem:[#allocation2 + $0x110] sm:$0xfc]
        %v1587 = vld [vmem:[#allocation2 + $0x118] sm:$0x1]
        %v1588 = vld [vmem:[#allocation2 + $0x120] sm:$0x1]
        %v1589 = vld [vmem:[#allocation2 + $0x128] sm:$0x1]
        %v1590 = vld [vmem:[#allocation2 + $0x130] sm:$0x1]
        %v1591 = vld [vmem:[#allocation2 + $0x138] sm:$0x1]
        %v1592 = vld [vmem:[#allocation2 + $0x140] sm:$0xfc]
        %v1593 = vld [vmem:[#allocation2 + $0x148] sm:$0xfc]
        %v1594 = vld [vmem:[#allocation2 + $0x150] sm:$0xfc]
        %v1595 = vld [vmem:[#allocation2 + $0x158] sm:$0xfc]
        %v1596 = vld [vmem:[#allocation2 + $0x160] sm:$0xfc]
        %v1597 = vld [vmem:[#allocation2 + $0x168] sm:$0x1]
        %v1598 = vld [vmem:[#allocation2 + $0x170] sm:$0x1]
        %v1599 = vld [vmem:[#allocation2 + $0x178] sm:$0x1]
        %v1600 = vld [vmem:[#allocation2 + $0x180] sm:$0x1]
        %v1601 = vld [vmem:[#allocation2 + $0x188] sm:$0x1]
        %v1602 = vld [vmem:[#allocation2 + $0x190] sm:$0xfc]
        %v1603 = vld [vmem:[#allocation2 + $0x198] sm:$0xfc]
        %v1604 = vld [vmem:[#allocation2 + $0x1a0] sm:$0xfc]
        %v1605 = vld [vmem:[#allocation2 + $0x1a8] sm:$0xfc]
        %v1606 = vld [vmem:[#allocation2 + $0x1b0] sm:$0xfc]
        %v1607 = vld [vmem:[#allocation2 + $0x1b8] sm:$0x1]
        %v1608 = vld [vmem:[#allocation2 + $0x1c0] sm:$0x1]
        %v1609 = vld [vmem:[#allocation2 + $0x1c8] sm:$0x1]
        %v1610 = vld [vmem:[#allocation2 + $0x1d0] sm:$0x1]
        %v1611 = vld [vmem:[#allocation2 + $0x1d8] sm:$0x1]
        %v1612 = vld [vmem:[#allocation2 + $0x1e0] sm:$0xfc]
        %v1613 = vld [vmem:[#allocation2 + $0x1e8] sm:$0xfc]
        %v1614 = vld [vmem:[#allocation2 + $0x1f0] sm:$0xfc]
        %v1615 = vld [vmem:[#allocation2 + $0x1f8] sm:$0xfc]
        %v1616 = vld [vmem:[#allocation2 + $0x200] sm:$0xfc]
        %v1617 = vld [vmem:[#allocation2 + $0x208] sm:$0x1]
        %v1618 = vld [vmem:[#allocation2 + $0x210] sm:$0x1]
        %v1619 = vld [vmem:[#allocation2 + $0x218] sm:$0x1]
        %v1620 = vld [vmem:[#allocation2 + $0x220] sm:$0x1]
        %v1621 = vld [vmem:[#allocation2 + $0x228] sm:$0x1]
        %v1622 = vld [vmem:[#allocation2 + $0x230] sm:$0xfc]
        %v1623 = vld [vmem:[#allocation2 + $0x238] sm:$0xfc]
        %v1624 = vld [vmem:[#allocation2 + $0x240] sm:$0xfc]
        %v1625 = vld [vmem:[#allocation2 + $0x248] sm:$0xfc]
        %v1626 = vld [vmem:[#allocation2 + $0x250] sm:$0xfc]
        %v1627 = vld [vmem:[#allocation2 + $0x258] sm:$0x1]
        %v1628 = vld [vmem:[#allocation2 + $0x260] sm:$0x1]
        %v1629 = vld [vmem:[#allocation2 + $0x268] sm:$0x1]
        %v1630 = vld [vmem:[#allocation2 + $0x270] sm:$0x1]
        %v1631 = vld [vmem:[#allocation2 + $0x278] sm:$0x1]
        %v1632 = vld [vmem:[#allocation2 + $0x280] sm:$0xfc]
        %v1633 = vld [vmem:[#allocation2 + $0x288] sm:$0xfc]
        %v1634 = vld [vmem:[#allocation2 + $0x290] sm:$0xfc]
        %v1635 = vld [vmem:[#allocation2 + $0x298] sm:$0xfc]
        %v1636 = vld [vmem:[#allocation2 + $0x2a0] sm:$0xfc]
        %v1637 = vld [vmem:[#allocation2 + $0x2a8] sm:$0x1]
        %v1638 = vld [vmem:[#allocation2 + $0x2b0] sm:$0x1]
        %v1639 = vld [vmem:[#allocation2 + $0x2b8] sm:$0x1]
        %v1640 = vld [vmem:[#allocation2 + $0x2c0] sm:$0x1]
        %v1641 = vld [vmem:[#allocation2 + $0x2c8] sm:$0x1]
        %s1642 = scalar_lea.vmem %s269, 2 [#allocation4]
        %v1643 = vld [vmem:[%s1642] ss:$4 sm:$0x1f]
        %v1645 = vlaneseq
        %v1646 = vshrl.u32 %v1645, 7
        %v1647 = vsub.s32 0, %v1646
        %v1648 = vrot.slane %v1643, %v1647
        %v1649 = vlaneseq
        %v1650 = vshrl.u32 %v1649, 7
        %v1651 = vsub.s32 1, %v1650
        %v1652 = vrot.slane %v1643, %v1651
        %v1653 = vlaneseq
        %v1654 = vshrl.u32 %v1653, 7
        %v1655 = vsub.s32 2, %v1654
        %v1656 = vrot.slane %v1643, %v1655
        %v1657 = vlaneseq
        %v1658 = vshrl.u32 %v1657, 7
        %v1659 = vsub.s32 3, %v1658
        %v1660 = vrot.slane %v1643, %v1659
        %v1661 = vlaneseq
        %v1662 = vshrl.u32 %v1661, 7
        %v1663 = vsub.s32 4, %v1662
        %v1664 = vrot.slane %v1643, %v1663
        %v1670 = vmul.f32 %v1552, %v1648
        %v1671 = vmul.f32 %v1553, %v1652
        %v1672 = vmul.f32 %v1554, %v1656
        %v1673 = vmul.f32 %v1555, %v1660
        %v1674 = vmul.f32 %v1556, %v1664
        %v1675 = vmul.f32 %v1557, %v1648
        %v1676 = vmul.f32 %v1558, %v1652
        %v1677 = vmul.f32 %v1559, %v1656
        %v1678 = vmul.f32 %v1560, %v1660
        %v1679 = vmul.f32 %v1561, %v1664
        %v1680 = vmul.f32 %v1562, %v1648
        %v1681 = vmul.f32 %v1563, %v1652
        %v1682 = vmul.f32 %v1564, %v1656
        %v1683 = vmul.f32 %v1565, %v1660
        %v1684 = vmul.f32 %v1566, %v1664
        %v1685 = vmul.f32 %v1567, %v1648
        %v1686 = vmul.f32 %v1568, %v1652
        %v1687 = vmul.f32 %v1569, %v1656
        %v1688 = vmul.f32 %v1570, %v1660
        %v1689 = vmul.f32 %v1571, %v1664
        %v1690 = vmul.f32 %v1572, %v1648
        %v1691 = vmul.f32 %v1573, %v1652
        %v1692 = vmul.f32 %v1574, %v1656
        %v1693 = vmul.f32 %v1575, %v1660
        %v1694 = vmul.f32 %v1576, %v1664
        %v1695 = vmul.f32 %v1577, %v1648
        %v1696 = vmul.f32 %v1578, %v1652
        %v1697 = vmul.f32 %v1579, %v1656
        %v1698 = vmul.f32 %v1580, %v1660
        %v1699 = vmul.f32 %v1581, %v1664
        %v1700 = vmul.f32 %v1582, %v1648
        %v1701 = vmul.f32 %v1583, %v1652
        %v1702 = vmul.f32 %v1584, %v1656
        %v1703 = vmul.f32 %v1585, %v1660
        %v1704 = vmul.f32 %v1586, %v1664
        %v1705 = vmul.f32 %v1587, %v1648
        %v1706 = vmul.f32 %v1588, %v1652
        %v1707 = vmul.f32 %v1589, %v1656
        %v1708 = vmul.f32 %v1590, %v1660
        %v1709 = vmul.f32 %v1591, %v1664
        %v1710 = vmul.f32 %v1592, %v1648
        %v1711 = vmul.f32 %v1593, %v1652
        %v1712 = vmul.f32 %v1594, %v1656
        %v1713 = vmul.f32 %v1595, %v1660
        %v1714 = vmul.f32 %v1596, %v1664
        %v1715 = vmul.f32 %v1597, %v1648
        %v1716 = vmul.f32 %v1598, %v1652
        %v1717 = vmul.f32 %v1599, %v1656
        %v1718 = vmul.f32 %v1600, %v1660
        %v1719 = vmul.f32 %v1601, %v1664
        %v1720 = vmul.f32 %v1602, %v1648
        %v1721 = vmul.f32 %v1603, %v1652
        %v1722 = vmul.f32 %v1604, %v1656
        %v1723 = vmul.f32 %v1605, %v1660
        %v1724 = vmul.f32 %v1606, %v1664
        %v1725 = vmul.f32 %v1607, %v1648
        %v1726 = vmul.f32 %v1608, %v1652
        %v1727 = vmul.f32 %v1609, %v1656
        %v1728 = vmul.f32 %v1610, %v1660
        %v1729 = vmul.f32 %v1611, %v1664
        %v1730 = vmul.f32 %v1612, %v1648
        %v1731 = vmul.f32 %v1613, %v1652
        %v1732 = vmul.f32 %v1614, %v1656
        %v1733 = vmul.f32 %v1615, %v1660
        %v1734 = vmul.f32 %v1616, %v1664
        %v1735 = vmul.f32 %v1617, %v1648
        %v1736 = vmul.f32 %v1618, %v1652
        %v1737 = vmul.f32 %v1619, %v1656
        %v1738 = vmul.f32 %v1620, %v1660
        %v1739 = vmul.f32 %v1621, %v1664
        %vm1810 = vcmask 1045504
        %v1811 = vrot.slane %v1670, 2
        %v1812 = vrot.slane %v1675, 2
        %v1813 = vsel %vm1810, %v1811, %v1812
        %v1814 = vrot.slane %v1671, 2
        %v1815 = vrot.slane %v1676, 2
        %v1816 = vsel %vm1810, %v1814, %v1815
        %v1817 = vrot.slane %v1672, 2
        %v1818 = vrot.slane %v1677, 2
        %v1819 = vsel %vm1810, %v1817, %v1818
        %v1820 = vrot.slane %v1673, 2
        %v1821 = vrot.slane %v1678, 2
        %v1822 = vsel %vm1810, %v1820, %v1821
        %v1823 = vrot.slane %v1674, 2
        %v1824 = vrot.slane %v1679, 2
        %v1825 = vsel %vm1810, %v1823, %v1824
        %v1826 = vrot.slane %v1680, 2
        %v1827 = vrot.slane %v1685, 2
        %v1828 = vsel %vm1810, %v1826, %v1827
        %v1829 = vrot.slane %v1681, 2
        %v1830 = vrot.slane %v1686, 2
        %v1831 = vsel %vm1810, %v1829, %v1830
        %v1832 = vrot.slane %v1682, 2
        %v1833 = vrot.slane %v1687, 2
        %v1834 = vsel %vm1810, %v1832, %v1833
        %v1835 = vrot.slane %v1683, 2
        %v1836 = vrot.slane %v1688, 2
        %v1837 = vsel %vm1810, %v1835, %v1836
        %v1838 = vrot.slane %v1684, 2
        %v1839 = vrot.slane %v1689, 2
        %v1840 = vsel %vm1810, %v1838, %v1839
        %v1841 = vrot.slane %v1690, 2
        %v1842 = vrot.slane %v1695, 2
        %v1843 = vsel %vm1810, %v1841, %v1842
        %v1844 = vrot.slane %v1691, 2
        %v1845 = vrot.slane %v1696, 2
        %v1846 = vsel %vm1810, %v1844, %v1845
        %v1847 = vrot.slane %v1692, 2
        %v1848 = vrot.slane %v1697, 2
        %v1849 = vsel %vm1810, %v1847, %v1848
        %v1850 = vrot.slane %v1693, 2
        %v1851 = vrot.slane %v1698, 2
        %v1852 = vsel %vm1810, %v1850, %v1851
        %v1853 = vrot.slane %v1694, 2
        %v1854 = vrot.slane %v1699, 2
        %v1855 = vsel %vm1810, %v1853, %v1854
        %v1856 = vrot.slane %v1700, 2
        %v1857 = vrot.slane %v1705, 2
        %v1858 = vsel %vm1810, %v1856, %v1857
        %v1859 = vrot.slane %v1701, 2
        %v1860 = vrot.slane %v1706, 2
        %v1861 = vsel %vm1810, %v1859, %v1860
        %v1862 = vrot.slane %v1702, 2
        %v1863 = vrot.slane %v1707, 2
        %v1864 = vsel %vm1810, %v1862, %v1863
        %v1865 = vrot.slane %v1703, 2
        %v1866 = vrot.slane %v1708, 2
        %v1867 = vsel %vm1810, %v1865, %v1866
        %v1868 = vrot.slane %v1704, 2
        %v1869 = vrot.slane %v1709, 2
        %v1870 = vsel %vm1810, %v1868, %v1869
        %v1871 = vrot.slane %v1710, 2
        %v1872 = vrot.slane %v1715, 2
        %v1873 = vsel %vm1810, %v1871, %v1872
        %v1874 = vrot.slane %v1711, 2
        %v1875 = vrot.slane %v1716, 2
        %v1876 = vsel %vm1810, %v1874, %v1875
        %v1877 = vrot.slane %v1712, 2
        %v1878 = vrot.slane %v1717, 2
        %v1879 = vsel %vm1810, %v1877, %v1878
        %v1880 = vrot.slane %v1713, 2
        %v1881 = vrot.slane %v1718, 2
        %v1882 = vsel %vm1810, %v1880, %v1881
        %v1883 = vrot.slane %v1714, 2
        %v1884 = vrot.slane %v1719, 2
        %v1885 = vsel %vm1810, %v1883, %v1884
        %v1886 = vrot.slane %v1720, 2
        %v1887 = vrot.slane %v1725, 2
        %v1888 = vsel %vm1810, %v1886, %v1887
        %v1889 = vrot.slane %v1721, 2
        %v1890 = vrot.slane %v1726, 2
        %v1891 = vsel %vm1810, %v1889, %v1890
        %v1892 = vrot.slane %v1722, 2
        %v1893 = vrot.slane %v1727, 2
        %v1894 = vsel %vm1810, %v1892, %v1893
        %v1895 = vrot.slane %v1723, 2
        %v1896 = vrot.slane %v1728, 2
        %v1897 = vsel %vm1810, %v1895, %v1896
        %v1898 = vrot.slane %v1724, 2
        %v1899 = vrot.slane %v1729, 2
        %v1900 = vsel %vm1810, %v1898, %v1899
        %v1901 = vrot.slane %v1730, 2
        %v1902 = vrot.slane %v1735, 2
        %v1903 = vsel %vm1810, %v1901, %v1902
        %v1904 = vrot.slane %v1731, 2
        %v1905 = vrot.slane %v1736, 2
        %v1906 = vsel %vm1810, %v1904, %v1905
        %v1907 = vrot.slane %v1732, 2
        %v1908 = vrot.slane %v1737, 2
        %v1909 = vsel %vm1810, %v1907, %v1908
        %v1910 = vrot.slane %v1733, 2
        %v1911 = vrot.slane %v1738, 2
        %v1912 = vsel %vm1810, %v1910, %v1911
        %v1913 = vrot.slane %v1734, 2
        %v1914 = vrot.slane %v1739, 2
        %v1915 = vsel %vm1810, %v1913, %v1914
        %v1951 = vadd.f32 %v1517, %v1813
        %v1952 = vadd.f32 %v1518, %v1816
        %v1953 = vadd.f32 %v1519, %v1819
        %v1954 = vadd.f32 %v1520, %v1822
        %v1955 = vadd.f32 %v1521, %v1825
        %v1956 = vadd.f32 %v1522, %v1828
        %v1957 = vadd.f32 %v1523, %v1831
        %v1958 = vadd.f32 %v1524, %v1834
        %v1959 = vadd.f32 %v1525, %v1837
        %v1960 = vadd.f32 %v1526, %v1840
        %v1961 = vadd.f32 %v1527, %v1843
        %v1962 = vadd.f32 %v1528, %v1846
        %v1963 = vadd.f32 %v1529, %v1849
        %v1964 = vadd.f32 %v1530, %v1852
        %v1965 = vadd.f32 %v1531, %v1855
        %v1966 = vadd.f32 %v1532, %v1858
        %v1967 = vadd.f32 %v1533, %v1861
        %v1968 = vadd.f32 %v1534, %v1864
        %v1969 = vadd.f32 %v1535, %v1867
        %v1970 = vadd.f32 %v1536, %v1870
        %v1971 = vadd.f32 %v1537, %v1873
        %v1972 = vadd.f32 %v1538, %v1876
        %v1973 = vadd.f32 %v1539, %v1879
        %v1974 = vadd.f32 %v1540, %v1882
        %v1975 = vadd.f32 %v1541, %v1885
        %v1976 = vadd.f32 %v1542, %v1888
        %v1977 = vadd.f32 %v1543, %v1891
        %v1978 = vadd.f32 %v1544, %v1894
        %v1979 = vadd.f32 %v1545, %v1897
        %v1980 = vadd.f32 %v1546, %v1900
        %v1981 = vadd.f32 %v1547, %v1903
        %v1982 = vadd.f32 %v1548, %v1906
        %v1983 = vadd.f32 %v1549, %v1909
        %v1984 = vadd.f32 %v1550, %v1912
        %v1985 = vadd.f32 %v1551, %v1915
        %s1986 = scalar_lea.vmem %s702, 2 [#allocation4]
        %v1987 = vld [vmem:[%s1986] ss:$4 sm:$0x1f]
        %v1989 = vlaneseq
        %v1990 = vshrl.u32 %v1989, 7
        %v1991 = vsub.s32 0, %v1990
        %v1992 = vrot.slane %v1987, %v1991
        %v1993 = vlaneseq
        %v1994 = vshrl.u32 %v1993, 7
        %v1995 = vsub.s32 1, %v1994
        %v1996 = vrot.slane %v1987, %v1995
        %v1997 = vlaneseq
        %v1998 = vshrl.u32 %v1997, 7
        %v1999 = vsub.s32 2, %v1998
        %v2000 = vrot.slane %v1987, %v1999
        %v2001 = vlaneseq
        %v2002 = vshrl.u32 %v2001, 7
        %v2003 = vsub.s32 3, %v2002
        %v2004 = vrot.slane %v1987, %v2003
        %v2005 = vlaneseq
        %v2006 = vshrl.u32 %v2005, 7
        %v2007 = vsub.s32 4, %v2006
        %v2008 = vrot.slane %v1987, %v2007
        %v2014 = vmul.f32 %v1562, %v1992
        %v2015 = vmul.f32 %v1563, %v1996
        %v2016 = vmul.f32 %v1564, %v2000
        %v2017 = vmul.f32 %v1565, %v2004
        %v2018 = vmul.f32 %v1566, %v2008
        %v2019 = vmul.f32 %v1567, %v1992
        %v2020 = vmul.f32 %v1568, %v1996
        %v2021 = vmul.f32 %v1569, %v2000
        %v2022 = vmul.f32 %v1570, %v2004
        %v2023 = vmul.f32 %v1571, %v2008
        %v2024 = vmul.f32 %v1572, %v1992
        %v2025 = vmul.f32 %v1573, %v1996
        %v2026 = vmul.f32 %v1574, %v2000
        %v2027 = vmul.f32 %v1575, %v2004
        %v2028 = vmul.f32 %v1576, %v2008
        %v2029 = vmul.f32 %v1577, %v1992
        %v2030 = vmul.f32 %v1578, %v1996
        %v2031 = vmul.f32 %v1579, %v2000
        %v2032 = vmul.f32 %v1580, %v2004
        %v2033 = vmul.f32 %v1581, %v2008
        %v2034 = vmul.f32 %v1582, %v1992
        %v2035 = vmul.f32 %v1583, %v1996
        %v2036 = vmul.f32 %v1584, %v2000
        %v2037 = vmul.f32 %v1585, %v2004
        %v2038 = vmul.f32 %v1586, %v2008
        %v2039 = vmul.f32 %v1587, %v1992
        %v2040 = vmul.f32 %v1588, %v1996
        %v2041 = vmul.f32 %v1589, %v2000
        %v2042 = vmul.f32 %v1590, %v2004
        %v2043 = vmul.f32 %v1591, %v2008
        %v2044 = vmul.f32 %v1592, %v1992
        %v2045 = vmul.f32 %v1593, %v1996
        %v2046 = vmul.f32 %v1594, %v2000
        %v2047 = vmul.f32 %v1595, %v2004
        %v2048 = vmul.f32 %v1596, %v2008
        %v2049 = vmul.f32 %v1597, %v1992
        %v2050 = vmul.f32 %v1598, %v1996
        %v2051 = vmul.f32 %v1599, %v2000
        %v2052 = vmul.f32 %v1600, %v2004
        %v2053 = vmul.f32 %v1601, %v2008
        %v2054 = vmul.f32 %v1602, %v1992
        %v2055 = vmul.f32 %v1603, %v1996
        %v2056 = vmul.f32 %v1604, %v2000
        %v2057 = vmul.f32 %v1605, %v2004
        %v2058 = vmul.f32 %v1606, %v2008
        %v2059 = vmul.f32 %v1607, %v1992
        %v2060 = vmul.f32 %v1608, %v1996
        %v2061 = vmul.f32 %v1609, %v2000
        %v2062 = vmul.f32 %v1610, %v2004
        %v2063 = vmul.f32 %v1611, %v2008
        %v2064 = vmul.f32 %v1612, %v1992
        %v2065 = vmul.f32 %v1613, %v1996
        %v2066 = vmul.f32 %v1614, %v2000
        %v2067 = vmul.f32 %v1615, %v2004
        %v2068 = vmul.f32 %v1616, %v2008
        %v2069 = vmul.f32 %v1617, %v1992
        %v2070 = vmul.f32 %v1618, %v1996
        %v2071 = vmul.f32 %v1619, %v2000
        %v2072 = vmul.f32 %v1620, %v2004
        %v2073 = vmul.f32 %v1621, %v2008
        %v2074 = vmul.f32 %v1622, %v1992
        %v2075 = vmul.f32 %v1623, %v1996
        %v2076 = vmul.f32 %v1624, %v2000
        %v2077 = vmul.f32 %v1625, %v2004
        %v2078 = vmul.f32 %v1626, %v2008
        %v2079 = vmul.f32 %v1627, %v1992
        %v2080 = vmul.f32 %v1628, %v1996
        %v2081 = vmul.f32 %v1629, %v2000
        %v2082 = vmul.f32 %v1630, %v2004
        %v2083 = vmul.f32 %v1631, %v2008
        %v2154 = vrot.slane %v2014, 2
        %v2155 = vrot.slane %v2019, 2
        %v2156 = vsel %vm1810, %v2154, %v2155
        %v2157 = vrot.slane %v2015, 2
        %v2158 = vrot.slane %v2020, 2
        %v2159 = vsel %vm1810, %v2157, %v2158
        %v2160 = vrot.slane %v2016, 2
        %v2161 = vrot.slane %v2021, 2
        %v2162 = vsel %vm1810, %v2160, %v2161
        %v2163 = vrot.slane %v2017, 2
        %v2164 = vrot.slane %v2022, 2
        %v2165 = vsel %vm1810, %v2163, %v2164
        %v2166 = vrot.slane %v2018, 2
        %v2167 = vrot.slane %v2023, 2
        %v2168 = vsel %vm1810, %v2166, %v2167
        %v2169 = vrot.slane %v2024, 2
        %v2170 = vrot.slane %v2029, 2
        %v2171 = vsel %vm1810, %v2169, %v2170
        %v2172 = vrot.slane %v2025, 2
        %v2173 = vrot.slane %v2030, 2
        %v2174 = vsel %vm1810, %v2172, %v2173
        %v2175 = vrot.slane %v2026, 2
        %v2176 = vrot.slane %v2031, 2
        %v2177 = vsel %vm1810, %v2175, %v2176
        %v2178 = vrot.slane %v2027, 2
        %v2179 = vrot.slane %v2032, 2
        %v2180 = vsel %vm1810, %v2178, %v2179
        %v2181 = vrot.slane %v2028, 2
        %v2182 = vrot.slane %v2033, 2
        %v2183 = vsel %vm1810, %v2181, %v2182
        %v2184 = vrot.slane %v2034, 2
        %v2185 = vrot.slane %v2039, 2
        %v2186 = vsel %vm1810, %v2184, %v2185
        %v2187 = vrot.slane %v2035, 2
        %v2188 = vrot.slane %v2040, 2
        %v2189 = vsel %vm1810, %v2187, %v2188
        %v2190 = vrot.slane %v2036, 2
        %v2191 = vrot.slane %v2041, 2
        %v2192 = vsel %vm1810, %v2190, %v2191
        %v2193 = vrot.slane %v2037, 2
        %v2194 = vrot.slane %v2042, 2
        %v2195 = vsel %vm1810, %v2193, %v2194
        %v2196 = vrot.slane %v2038, 2
        %v2197 = vrot.slane %v2043, 2
        %v2198 = vsel %vm1810, %v2196, %v2197
        %v2199 = vrot.slane %v2044, 2
        %v2200 = vrot.slane %v2049, 2
        %v2201 = vsel %vm1810, %v2199, %v2200
        %v2202 = vrot.slane %v2045, 2
        %v2203 = vrot.slane %v2050, 2
        %v2204 = vsel %vm1810, %v2202, %v2203
        %v2205 = vrot.slane %v2046, 2
        %v2206 = vrot.slane %v2051, 2
        %v2207 = vsel %vm1810, %v2205, %v2206
        %v2208 = vrot.slane %v2047, 2
        %v2209 = vrot.slane %v2052, 2
        %v2210 = vsel %vm1810, %v2208, %v2209
        %v2211 = vrot.slane %v2048, 2
        %v2212 = vrot.slane %v2053, 2
        %v2213 = vsel %vm1810, %v2211, %v2212
        %v2214 = vrot.slane %v2054, 2
        %v2215 = vrot.slane %v2059, 2
        %v2216 = vsel %vm1810, %v2214, %v2215
        %v2217 = vrot.slane %v2055, 2
        %v2218 = vrot.slane %v2060, 2
        %v2219 = vsel %vm1810, %v2217, %v2218
        %v2220 = vrot.slane %v2056, 2
        %v2221 = vrot.slane %v2061, 2
        %v2222 = vsel %vm1810, %v2220, %v2221
        %v2223 = vrot.slane %v2057, 2
        %v2224 = vrot.slane %v2062, 2
        %v2225 = vsel %vm1810, %v2223, %v2224
        %v2226 = vrot.slane %v2058, 2
        %v2227 = vrot.slane %v2063, 2
        %v2228 = vsel %vm1810, %v2226, %v2227
        %v2229 = vrot.slane %v2064, 2
        %v2230 = vrot.slane %v2069, 2
        %v2231 = vsel %vm1810, %v2229, %v2230
        %v2232 = vrot.slane %v2065, 2
        %v2233 = vrot.slane %v2070, 2
        %v2234 = vsel %vm1810, %v2232, %v2233
        %v2235 = vrot.slane %v2066, 2
        %v2236 = vrot.slane %v2071, 2
        %v2237 = vsel %vm1810, %v2235, %v2236
        %v2238 = vrot.slane %v2067, 2
        %v2239 = vrot.slane %v2072, 2
        %v2240 = vsel %vm1810, %v2238, %v2239
        %v2241 = vrot.slane %v2068, 2
        %v2242 = vrot.slane %v2073, 2
        %v2243 = vsel %vm1810, %v2241, %v2242
        %v2244 = vrot.slane %v2074, 2
        %v2245 = vrot.slane %v2079, 2
        %v2246 = vsel %vm1810, %v2244, %v2245
        %v2247 = vrot.slane %v2075, 2
        %v2248 = vrot.slane %v2080, 2
        %v2249 = vsel %vm1810, %v2247, %v2248
        %v2250 = vrot.slane %v2076, 2
        %v2251 = vrot.slane %v2081, 2
        %v2252 = vsel %vm1810, %v2250, %v2251
        %v2253 = vrot.slane %v2077, 2
        %v2254 = vrot.slane %v2082, 2
        %v2255 = vsel %vm1810, %v2253, %v2254
        %v2256 = vrot.slane %v2078, 2
        %v2257 = vrot.slane %v2083, 2
        %v2258 = vsel %vm1810, %v2256, %v2257
        %v2294 = vadd.f32 %v1951, %v2156
        %v2295 = vadd.f32 %v1952, %v2159
        %v2296 = vadd.f32 %v1953, %v2162
        %v2297 = vadd.f32 %v1954, %v2165
        %v2298 = vadd.f32 %v1955, %v2168
        %v2299 = vadd.f32 %v1956, %v2171
        %v2300 = vadd.f32 %v1957, %v2174
        %v2301 = vadd.f32 %v1958, %v2177
        %v2302 = vadd.f32 %v1959, %v2180
        %v2303 = vadd.f32 %v1960, %v2183
        %v2304 = vadd.f32 %v1961, %v2186
        %v2305 = vadd.f32 %v1962, %v2189
        %v2306 = vadd.f32 %v1963, %v2192
        %v2307 = vadd.f32 %v1964, %v2195
        %v2308 = vadd.f32 %v1965, %v2198
        %v2309 = vadd.f32 %v1966, %v2201
        %v2310 = vadd.f32 %v1967, %v2204
        %v2311 = vadd.f32 %v1968, %v2207
        %v2312 = vadd.f32 %v1969, %v2210
        %v2313 = vadd.f32 %v1970, %v2213
        %v2314 = vadd.f32 %v1971, %v2216
        %v2315 = vadd.f32 %v1972, %v2219
        %v2316 = vadd.f32 %v1973, %v2222
        %v2317 = vadd.f32 %v1974, %v2225
        %v2318 = vadd.f32 %v1975, %v2228
        %v2319 = vadd.f32 %v1976, %v2231
        %v2320 = vadd.f32 %v1977, %v2234
        %v2321 = vadd.f32 %v1978, %v2237
        %v2322 = vadd.f32 %v1979, %v2240
        %v2323 = vadd.f32 %v1980, %v2243
        %v2324 = vadd.f32 %v1981, %v2246
        %v2325 = vadd.f32 %v1982, %v2249
        %v2326 = vadd.f32 %v1983, %v2252
        %v2327 = vadd.f32 %v1984, %v2255
        %v2328 = vadd.f32 %v1985, %v2258
        %s2329 = scalar_lea.vmem %s800, 2 [#allocation4]
        %v2330 = vld [vmem:[%s2329] ss:$4 sm:$0x1f]
        %v2332 = vlaneseq
        %v2333 = vshrl.u32 %v2332, 7
        %v2334 = vsub.s32 0, %v2333
        %v2335 = vrot.slane %v2330, %v2334
        %v2336 = vlaneseq
        %v2337 = vshrl.u32 %v2336, 7
        %v2338 = vsub.s32 1, %v2337
        %v2339 = vrot.slane %v2330, %v2338
        %v2340 = vlaneseq
        %v2341 = vshrl.u32 %v2340, 7
        %v2342 = vsub.s32 2, %v2341
        %v2343 = vrot.slane %v2330, %v2342
        %v2344 = vlaneseq
        %v2345 = vshrl.u32 %v2344, 7
        %v2346 = vsub.s32 3, %v2345
        %v2347 = vrot.slane %v2330, %v2346
        %v2348 = vlaneseq
        %v2349 = vshrl.u32 %v2348, 7
        %v2350 = vsub.s32 4, %v2349
        %v2351 = vrot.slane %v2330, %v2350
        %v2357 = vmul.f32 %v1572, %v2335
        %v2358 = vmul.f32 %v1573, %v2339
        %v2359 = vmul.f32 %v1574, %v2343
        %v2360 = vmul.f32 %v1575, %v2347
        %v2361 = vmul.f32 %v1576, %v2351
        %v2362 = vmul.f32 %v1577, %v2335
        %v2363 = vmul.f32 %v1578, %v2339
        %v2364 = vmul.f32 %v1579, %v2343
        %v2365 = vmul.f32 %v1580, %v2347
        %v2366 = vmul.f32 %v1581, %v2351
        %v2367 = vmul.f32 %v1582, %v2335
        %v2368 = vmul.f32 %v1583, %v2339
        %v2369 = vmul.f32 %v1584, %v2343
        %v2370 = vmul.f32 %v1585, %v2347
        %v2371 = vmul.f32 %v1586, %v2351
        %v2372 = vmul.f32 %v1587, %v2335
        %v2373 = vmul.f32 %v1588, %v2339
        %v2374 = vmul.f32 %v1589, %v2343
        %v2375 = vmul.f32 %v1590, %v2347
        %v2376 = vmul.f32 %v1591, %v2351
        %v2377 = vmul.f32 %v1592, %v2335
        %v2378 = vmul.f32 %v1593, %v2339
        %v2379 = vmul.f32 %v1594, %v2343
        %v2380 = vmul.f32 %v1595, %v2347
        %v2381 = vmul.f32 %v1596, %v2351
        %v2382 = vmul.f32 %v1597, %v2335
        %v2383 = vmul.f32 %v1598, %v2339
        %v2384 = vmul.f32 %v1599, %v2343
        %v2385 = vmul.f32 %v1600, %v2347
        %v2386 = vmul.f32 %v1601, %v2351
        %v2387 = vmul.f32 %v1602, %v2335
        %v2388 = vmul.f32 %v1603, %v2339
        %v2389 = vmul.f32 %v1604, %v2343
        %v2390 = vmul.f32 %v1605, %v2347
        %v2391 = vmul.f32 %v1606, %v2351
        %v2392 = vmul.f32 %v1607, %v2335
        %v2393 = vmul.f32 %v1608, %v2339
        %v2394 = vmul.f32 %v1609, %v2343
        %v2395 = vmul.f32 %v1610, %v2347
        %v2396 = vmul.f32 %v1611, %v2351
        %v2397 = vmul.f32 %v1612, %v2335
        %v2398 = vmul.f32 %v1613, %v2339
        %v2399 = vmul.f32 %v1614, %v2343
        %v2400 = vmul.f32 %v1615, %v2347
        %v2401 = vmul.f32 %v1616, %v2351
        %v2402 = vmul.f32 %v1617, %v2335
        %v2403 = vmul.f32 %v1618, %v2339
        %v2404 = vmul.f32 %v1619, %v2343
        %v2405 = vmul.f32 %v1620, %v2347
        %v2406 = vmul.f32 %v1621, %v2351
        %v2407 = vmul.f32 %v1622, %v2335
        %v2408 = vmul.f32 %v1623, %v2339
        %v2409 = vmul.f32 %v1624, %v2343
        %v2410 = vmul.f32 %v1625, %v2347
        %v2411 = vmul.f32 %v1626, %v2351
        %v2412 = vmul.f32 %v1627, %v2335
        %v2413 = vmul.f32 %v1628, %v2339
        %v2414 = vmul.f32 %v1629, %v2343
        %v2415 = vmul.f32 %v1630, %v2347
        %v2416 = vmul.f32 %v1631, %v2351
        %v2417 = vmul.f32 %v1632, %v2335
        %v2418 = vmul.f32 %v1633, %v2339
        %v2419 = vmul.f32 %v1634, %v2343
        %v2420 = vmul.f32 %v1635, %v2347
        %v2421 = vmul.f32 %v1636, %v2351
        %v2422 = vmul.f32 %v1637, %v2335
        %v2423 = vmul.f32 %v1638, %v2339
        %v2424 = vmul.f32 %v1639, %v2343
        %v2425 = vmul.f32 %v1640, %v2347
        %v2426 = vmul.f32 %v1641, %v2351
        %v2497 = vrot.slane %v2357, 2
        %v2498 = vrot.slane %v2362, 2
        %v2499 = vsel %vm1810, %v2497, %v2498
        %v2500 = vrot.slane %v2358, 2
        %v2501 = vrot.slane %v2363, 2
        %v2502 = vsel %vm1810, %v2500, %v2501
        %v2503 = vrot.slane %v2359, 2
        %v2504 = vrot.slane %v2364, 2
        %v2505 = vsel %vm1810, %v2503, %v2504
        %v2506 = vrot.slane %v2360, 2
        %v2507 = vrot.slane %v2365, 2
        %v2508 = vsel %vm1810, %v2506, %v2507
        %v2509 = vrot.slane %v2361, 2
        %v2510 = vrot.slane %v2366, 2
        %v2511 = vsel %vm1810, %v2509, %v2510
        %v2512 = vrot.slane %v2367, 2
        %v2513 = vrot.slane %v2372, 2
        %v2514 = vsel %vm1810, %v2512, %v2513
        %v2515 = vrot.slane %v2368, 2
        %v2516 = vrot.slane %v2373, 2
        %v2517 = vsel %vm1810, %v2515, %v2516
        %v2518 = vrot.slane %v2369, 2
        %v2519 = vrot.slane %v2374, 2
        %v2520 = vsel %vm1810, %v2518, %v2519
        %v2521 = vrot.slane %v2370, 2
        %v2522 = vrot.slane %v2375, 2
        %v2523 = vsel %vm1810, %v2521, %v2522
        %v2524 = vrot.slane %v2371, 2
        %v2525 = vrot.slane %v2376, 2
        %v2526 = vsel %vm1810, %v2524, %v2525
        %v2527 = vrot.slane %v2377, 2
        %v2528 = vrot.slane %v2382, 2
        %v2529 = vsel %vm1810, %v2527, %v2528
        %v2530 = vrot.slane %v2378, 2
        %v2531 = vrot.slane %v2383, 2
        %v2532 = vsel %vm1810, %v2530, %v2531
        %v2533 = vrot.slane %v2379, 2
        %v2534 = vrot.slane %v2384, 2
        %v2535 = vsel %vm1810, %v2533, %v2534
        %v2536 = vrot.slane %v2380, 2
        %v2537 = vrot.slane %v2385, 2
        %v2538 = vsel %vm1810, %v2536, %v2537
        %v2539 = vrot.slane %v2381, 2
        %v2540 = vrot.slane %v2386, 2
        %v2541 = vsel %vm1810, %v2539, %v2540
        %v2542 = vrot.slane %v2387, 2
        %v2543 = vrot.slane %v2392, 2
        %v2544 = vsel %vm1810, %v2542, %v2543
        %v2545 = vrot.slane %v2388, 2
        %v2546 = vrot.slane %v2393, 2
        %v2547 = vsel %vm1810, %v2545, %v2546
        %v2548 = vrot.slane %v2389, 2
        %v2549 = vrot.slane %v2394, 2
        %v2550 = vsel %vm1810, %v2548, %v2549
        %v2551 = vrot.slane %v2390, 2
        %v2552 = vrot.slane %v2395, 2
        %v2553 = vsel %vm1810, %v2551, %v2552
        %v2554 = vrot.slane %v2391, 2
        %v2555 = vrot.slane %v2396, 2
        %v2556 = vsel %vm1810, %v2554, %v2555
        %v2557 = vrot.slane %v2397, 2
        %v2558 = vrot.slane %v2402, 2
        %v2559 = vsel %vm1810, %v2557, %v2558
        %v2560 = vrot.slane %v2398, 2
        %v2561 = vrot.slane %v2403, 2
        %v2562 = vsel %vm1810, %v2560, %v2561
        %v2563 = vrot.slane %v2399, 2
        %v2564 = vrot.slane %v2404, 2
        %v2565 = vsel %vm1810, %v2563, %v2564
        %v2566 = vrot.slane %v2400, 2
        %v2567 = vrot.slane %v2405, 2
        %v2568 = vsel %vm1810, %v2566, %v2567
        %v2569 = vrot.slane %v2401, 2
        %v2570 = vrot.slane %v2406, 2
        %v2571 = vsel %vm1810, %v2569, %v2570
        %v2572 = vrot.slane %v2407, 2
        %v2573 = vrot.slane %v2412, 2
        %v2574 = vsel %vm1810, %v2572, %v2573
        %v2575 = vrot.slane %v2408, 2
        %v2576 = vrot.slane %v2413, 2
        %v2577 = vsel %vm1810, %v2575, %v2576
        %v2578 = vrot.slane %v2409, 2
        %v2579 = vrot.slane %v2414, 2
        %v2580 = vsel %vm1810, %v2578, %v2579
        %v2581 = vrot.slane %v2410, 2
        %v2582 = vrot.slane %v2415, 2
        %v2583 = vsel %vm1810, %v2581, %v2582
        %v2584 = vrot.slane %v2411, 2
        %v2585 = vrot.slane %v2416, 2
        %v2586 = vsel %vm1810, %v2584, %v2585
        %v2587 = vrot.slane %v2417, 2
        %v2588 = vrot.slane %v2422, 2
        %v2589 = vsel %vm1810, %v2587, %v2588
        %v2590 = vrot.slane %v2418, 2
        %v2591 = vrot.slane %v2423, 2
        %v2592 = vsel %vm1810, %v2590, %v2591
        %v2593 = vrot.slane %v2419, 2
        %v2594 = vrot.slane %v2424, 2
        %v2595 = vsel %vm1810, %v2593, %v2594
        %v2596 = vrot.slane %v2420, 2
        %v2597 = vrot.slane %v2425, 2
        %v2598 = vsel %vm1810, %v2596, %v2597
        %v2599 = vrot.slane %v2421, 2
        %v2600 = vrot.slane %v2426, 2
        %v2601 = vsel %vm1810, %v2599, %v2600
        %v2637 = vadd.f32 %v2294, %v2499
        %v2638 = vadd.f32 %v2295, %v2502
        %v2639 = vadd.f32 %v2296, %v2505
        %v2640 = vadd.f32 %v2297, %v2508
        %v2641 = vadd.f32 %v2298, %v2511
        %v2642 = vadd.f32 %v2299, %v2514
        %v2643 = vadd.f32 %v2300, %v2517
        %v2644 = vadd.f32 %v2301, %v2520
        %v2645 = vadd.f32 %v2302, %v2523
        %v2646 = vadd.f32 %v2303, %v2526
        %v2647 = vadd.f32 %v2304, %v2529
        %v2648 = vadd.f32 %v2305, %v2532
        %v2649 = vadd.f32 %v2306, %v2535
        %v2650 = vadd.f32 %v2307, %v2538
        %v2651 = vadd.f32 %v2308, %v2541
        %v2652 = vadd.f32 %v2309, %v2544
        %v2653 = vadd.f32 %v2310, %v2547
        %v2654 = vadd.f32 %v2311, %v2550
        %v2655 = vadd.f32 %v2312, %v2553
        %v2656 = vadd.f32 %v2313, %v2556
        %v2657 = vadd.f32 %v2314, %v2559
        %v2658 = vadd.f32 %v2315, %v2562
        %v2659 = vadd.f32 %v2316, %v2565
        %v2660 = vadd.f32 %v2317, %v2568
        %v2661 = vadd.f32 %v2318, %v2571
        %v2662 = vadd.f32 %v2319, %v2574
        %v2663 = vadd.f32 %v2320, %v2577
        %v2664 = vadd.f32 %v2321, %v2580
        %v2665 = vadd.f32 %v2322, %v2583
        %v2666 = vadd.f32 %v2323, %v2586
        %v2667 = vadd.f32 %v2324, %v2589
        %v2668 = vadd.f32 %v2325, %v2592
        %v2669 = vadd.f32 %v2326, %v2595
        %v2670 = vadd.f32 %v2327, %v2598
        %v2671 = vadd.f32 %v2328, %v2601
        %2672 = vst [vmem:[%s290] sm:$0x7f] %v2637
        %2673 = vst [vmem:[%s290 + $0x8] sm:$0x7f] %v2638
        %2674 = vst [vmem:[%s290 + $0x10] sm:$0x7f] %v2639
        %2675 = vst [vmem:[%s290 + $0x18] sm:$0x7f] %v2640
        %2676 = vst [vmem:[%s290 + $0x20] sm:$0x7f] %v2641
        %2677 = vst [vmem:[%s290 + $0x28] sm:$0x7f] %v2642
        %2678 = vst [vmem:[%s290 + $0x30] sm:$0x7f] %v2643
        %2679 = vst [vmem:[%s290 + $0x38] sm:$0x7f] %v2644
        %2680 = vst [vmem:[%s290 + $0x40] sm:$0x7f] %v2645
        %2681 = vst [vmem:[%s290 + $0x48] sm:$0x7f] %v2646
        %2682 = vst [vmem:[%s290 + $0x50] sm:$0x7f] %v2647
        %2683 = vst [vmem:[%s290 + $0x58] sm:$0x7f] %v2648
        %2684 = vst [vmem:[%s290 + $0x60] sm:$0x7f] %v2649
        %2685 = vst [vmem:[%s290 + $0x68] sm:$0x7f] %v2650
        %2686 = vst [vmem:[%s290 + $0x70] sm:$0x7f] %v2651
        %2687 = vst [vmem:[%s290 + $0x78] sm:$0x7f] %v2652
        %2688 = vst [vmem:[%s290 + $0x80] sm:$0x7f] %v2653
        %2689 = vst [vmem:[%s290 + $0x88] sm:$0x7f] %v2654
        %2690 = vst [vmem:[%s290 + $0x90] sm:$0x7f] %v2655
        %2691 = vst [vmem:[%s290 + $0x98] sm:$0x7f] %v2656
        %2692 = vst [vmem:[%s290 + $0xa0] sm:$0x7f] %v2657
        %2693 = vst [vmem:[%s290 + $0xa8] sm:$0x7f] %v2658
        %2694 = vst [vmem:[%s290 + $0xb0] sm:$0x7f] %v2659
        %2695 = vst [vmem:[%s290 + $0xb8] sm:$0x7f] %v2660
        %2696 = vst [vmem:[%s290 + $0xc0] sm:$0x7f] %v2661
        %2697 = vst [vmem:[%s290 + $0xc8] sm:$0x7f] %v2662
        %2698 = vst [vmem:[%s290 + $0xd0] sm:$0x7f] %v2663
        %2699 = vst [vmem:[%s290 + $0xd8] sm:$0x7f] %v2664
        %2700 = vst [vmem:[%s290 + $0xe0] sm:$0x7f] %v2665
        %2701 = vst [vmem:[%s290 + $0xe8] sm:$0x7f] %v2666
        %2702 = vst [vmem:[%s290 + $0xf0] sm:$0x7f] %v2667
        %2703 = vst [vmem:[%s290 + $0xf8] sm:$0x7f] %v2668
        %2704 = vst [vmem:[%s290 + $0x100] sm:$0x7f] %v2669
        %2705 = vst [vmem:[%s290 + $0x108] sm:$0x7f] %v2670
        %2706 = vst [vmem:[%s290 + $0x110] sm:$0x7f] %v2671
        %s2707 = sand.u32 %s73, 1
        %s2708 = sand.u32 %s73, 1
        %s2709 = smul.addr %s2708, 280
        %s2710 = scalar_lea.vmem [#allocation5], %s2709
        // Predicated region
        $region78: #{depthwise_conv3x3.1} parent=68 // pred_check
          %p2711 = pneg %p83
        $region79: #{depthwise_conv3x3.1} parent=68 // pred_check_branch
          %2713 = sbr.rel (%p2711) target = $region81
        $region80: #{depthwise_conv3x3.1} parent=68 // pred_region
          %s2714 = smul.u32 5, %s13
          %s2715 = smul.addr %s2714, 8
          %s2716 = scalar_lea.vmem %s2, %s2715
          // Predicated region
          $region82: #{depthwise_conv3x3.1} parent=80 // pred_check
            _
          $region83: #{depthwise_conv3x3.1} parent=80 // pred_check_branch
            %2718 = sbr.rel (0) target = $region85
          $region84: #{depthwise_conv3x3.1} parent=80 // pred_region
            // Predicated region
            $region86: #{depthwise_conv3x3.1} parent=84 // pred_check
              _
            $region87: #{depthwise_conv3x3.1} parent=84 // pred_check_branch
              %2720 = sbr.rel (0) target = $region89
            $region88: #{depthwise_conv3x3.1} parent=84 // pred_region
              loop: start=0, step=1, limit=1
              $region90: #{depthwise_conv3x3.1} parent=88 // loop_pre_header
                _
              $region91: #{depthwise_conv3x3.1} parent=88 // loop_header
                %s2722 = sphi 0, %s2726
                %p2723 = scmp.ge.s32.totalorder %s2722, 1
                %s2727 = sphi %s2710, %s2710
                %s2728 = sphi %s2716, %s2716
              $region92: #{depthwise_conv3x3.1} parent=88 // loop_header_branch
                %2725 = sbr.rel (%p2723) target = $region96
              $region93: #{depthwise_conv3x3.1} parent=88 // loop_body
                %v2729 = vld [vmem:[%s2727] sm:$0xff]
                %2730 = vst [vmem:[%s2728] sm:$0xff] %v2729
                %v2731 = vld [vmem:[%s2727 + $0x8] sm:$0xff]
                %2732 = vst [vmem:[%s2728 + $0x8] sm:$0xff] %v2731
                %v2733 = vld [vmem:[%s2727 + $0x10] sm:$0xff]
                %2734 = vst [vmem:[%s2728 + $0x10] sm:$0xff] %v2733
                %v2735 = vld [vmem:[%s2727 + $0x18] sm:$0xff]
                %2736 = vst [vmem:[%s2728 + $0x18] sm:$0xff] %v2735
                %v2737 = vld [vmem:[%s2727 + $0x20] sm:$0xff]
                %2738 = vst [vmem:[%s2728 + $0x20] sm:$0xff] %v2737
                %v2739 = vld [vmem:[%s2727 + $0x28] sm:$0xff]
                %2740 = vst [vmem:[%s2728 + $0x78] sm:$0xff] %v2739
                %v2741 = vld [vmem:[%s2727 + $0x30] sm:$0xff]
                %2742 = vst [vmem:[%s2728 + $0x80] sm:$0xff] %v2741
                %v2743 = vld [vmem:[%s2727 + $0x38] sm:$0xff]
                %2744 = vst [vmem:[%s2728 + $0x88] sm:$0xff] %v2743
                %v2745 = vld [vmem:[%s2727 + $0x40] sm:$0xff]
                %2746 = vst [vmem:[%s2728 + $0x90] sm:$0xff] %v2745
                %v2747 = vld [vmem:[%s2727 + $0x48] sm:$0xff]
                %2748 = vst [vmem:[%s2728 + $0x98] sm:$0xff] %v2747
                %v2749 = vld [vmem:[%s2727 + $0x50] sm:$0xff]
                %2750 = vst [vmem:[%s2728 + $0xf0] sm:$0xff] %v2749
                %v2751 = vld [vmem:[%s2727 + $0x58] sm:$0xff]
                %2752 = vst [vmem:[%s2728 + $0xf8] sm:$0xff] %v2751
                %v2753 = vld [vmem:[%s2727 + $0x60] sm:$0xff]
                %2754 = vst [vmem:[%s2728 + $0x100] sm:$0xff] %v2753
                %v2755 = vld [vmem:[%s2727 + $0x68] sm:$0xff]
                %2756 = vst [vmem:[%s2728 + $0x108] sm:$0xff] %v2755
                %v2757 = vld [vmem:[%s2727 + $0x70] sm:$0xff]
                %2758 = vst [vmem:[%s2728 + $0x110] sm:$0xff] %v2757
                %v2759 = vld [vmem:[%s2727 + $0x78] sm:$0xff]
                %2760 = vst [vmem:[%s2728 + $0x168] sm:$0xff] %v2759
                %v2761 = vld [vmem:[%s2727 + $0x80] sm:$0xff]
                %2762 = vst [vmem:[%s2728 + $0x170] sm:$0xff] %v2761
                %v2763 = vld [vmem:[%s2727 + $0x88] sm:$0xff]
                %2764 = vst [vmem:[%s2728 + $0x178] sm:$0xff] %v2763
                %v2765 = vld [vmem:[%s2727 + $0x90] sm:$0xff]
                %2766 = vst [vmem:[%s2728 + $0x180] sm:$0xff] %v2765
                %v2767 = vld [vmem:[%s2727 + $0x98] sm:$0xff]
                %2768 = vst [vmem:[%s2728 + $0x188] sm:$0xff] %v2767
                %v2769 = vld [vmem:[%s2727 + $0xa0] sm:$0xff]
                %2770 = vst [vmem:[%s2728 + $0x1e0] sm:$0xff] %v2769
                %v2771 = vld [vmem:[%s2727 + $0xa8] sm:$0xff]
                %2772 = vst [vmem:[%s2728 + $0x1e8] sm:$0xff] %v2771
                %v2773 = vld [vmem:[%s2727 + $0xb0] sm:$0xff]
                %2774 = vst [vmem:[%s2728 + $0x1f0] sm:$0xff] %v2773
                %v2775 = vld [vmem:[%s2727 + $0xb8] sm:$0xff]
                %2776 = vst [vmem:[%s2728 + $0x1f8] sm:$0xff] %v2775
                %v2777 = vld [vmem:[%s2727 + $0xc0] sm:$0xff]
                %2778 = vst [vmem:[%s2728 + $0x200] sm:$0xff] %v2777
                %v2779 = vld [vmem:[%s2727 + $0xc8] sm:$0xff]
                %2780 = vst [vmem:[%s2728 + $0x258] sm:$0xff] %v2779
                %v2781 = vld [vmem:[%s2727 + $0xd0] sm:$0xff]
                %2782 = vst [vmem:[%s2728 + $0x260] sm:$0xff] %v2781
                %v2783 = vld [vmem:[%s2727 + $0xd8] sm:$0xff]
                %2784 = vst [vmem:[%s2728 + $0x268] sm:$0xff] %v2783
                %v2785 = vld [vmem:[%s2727 + $0xe0] sm:$0xff]
                %2786 = vst [vmem:[%s2728 + $0x270] sm:$0xff] %v2785
                %v2787 = vld [vmem:[%s2727 + $0xe8] sm:$0xff]
                %2788 = vst [vmem:[%s2728 + $0x278] sm:$0xff] %v2787
                %v2789 = vld [vmem:[%s2727 + $0xf0] sm:$0xff]
                %2790 = vst [vmem:[%s2728 + $0x2d0] sm:$0xff] %v2789
                %v2791 = vld [vmem:[%s2727 + $0xf8] sm:$0xff]
                %2792 = vst [vmem:[%s2728 + $0x2d8] sm:$0xff] %v2791
                %v2793 = vld [vmem:[%s2727 + $0x100] sm:$0xff]
                %2794 = vst [vmem:[%s2728 + $0x2e0] sm:$0xff] %v2793
                %v2795 = vld [vmem:[%s2727 + $0x108] sm:$0xff]
                %2796 = vst [vmem:[%s2728 + $0x2e8] sm:$0xff] %v2795
                %v2797 = vld [vmem:[%s2727 + $0x110] sm:$0xff]
                %2798 = vst [vmem:[%s2728 + $0x2f0] sm:$0xff] %v2797
              $region94: #{depthwise_conv3x3.1} parent=88 // loop_footer
                %s2726 = sadd.s32 1, %s2722
              $region95: #{depthwise_conv3x3.1} parent=88 // loop_footer_branch
                %2721 = sbr.rel target = $region91
              $region96: #{depthwise_conv3x3.1} parent=88 // loop_exit
                _
            $region89: #{depthwise_conv3x3.1} parent=84 // pred_fallthru
              _
            // Predicated region
            $region97: #{depthwise_conv3x3.1} parent=84 // pred_check
              _
            $region98: #{depthwise_conv3x3.1} parent=84 // pred_check_branch
              %2800 = sbr.rel target = $region100
            $region99: #{depthwise_conv3x3.1} parent=84 // pred_region
              _
            $region100: #{depthwise_conv3x3.1} parent=84 // pred_fallthru
              _
          $region85: #{depthwise_conv3x3.1} parent=80 // pred_fallthru
            _
          %2801 = vnop
        $region81: #{depthwise_conv3x3.1} parent=68 // pred_fallthru
          _
      $region69: #{depthwise_conv3x3.1} parent=5 // pred_fallthru
        _
      %p2802 = scmp.le.s32.totalorder 2, %s8
      // Predicated region
      $region101: #{depthwise_conv3x3.1} parent=5 // pred_check
        %p2803 = pneg %p2802
      $region102: #{depthwise_conv3x3.1} parent=5 // pred_check_branch
        %2805 = sbr.rel (%p2803) target = $region104
      $region103: #{depthwise_conv3x3.1} parent=5 // pred_region
        %s2806 = ssub.s32 %s8, 2
        // Predicated region
        $region105: #{depthwise_conv3x3.1} parent=103 // pred_check
          %p2807 = pneg %p89
        $region106: #{depthwise_conv3x3.1} parent=103 // pred_check_branch
          %2809 = sbr.rel (%p2807) target = $region108
        $region107: #{depthwise_conv3x3.1} parent=103 // pred_region
          %s2810 = sand.u32 %s74, 1
          %s2811 = sand.u32 %s74, 1
          %s2812 = smul.addr %s2811, 280
          %s2813 = scalar_lea.vmem [#allocation5], %s2812
        $region108: #{depthwise_conv3x3.1} parent=103 // pred_fallthru
          _
      $region104: #{depthwise_conv3x3.1} parent=5 // pred_fallthru
        _
    $region6: #{depthwise_conv3x3.1} parent=1 // loop_footer
      %s12 = sadd.s32 1, %s8
    $region7: #{depthwise_conv3x3.1} parent=1 // loop_footer_branch
      %7 = sbr.rel target = $region3
    $region8: #{depthwise_conv3x3.1} parent=1 // loop_exit
      _

</llo_original>
